<compile_context>
chip_gen: v6e
topology: v6e:2x2x1
jax: 0.10.0
libtpu: 0.0.40
codegen_flags: <defaults>
</compile_context>

<pallas_src>
import math

import jax
import jax.numpy as jnp
from jax.experimental import pallas as pl
from jax.experimental.pallas import tpu as pltpu


def _memory_reader_kernel(mk_ref, qk_ref, mv_ref, o_ref, m_sc, l_sc, acc_sc):
    # mk_ref : (THW_t, CK)   memory keys chunk (CK minor -> standard MXU layout)
    # qk_ref : (CK, HW_t)    query keys tile (resident across THW steps)
    # mv_ref : (CV, THW_t)   memory values chunk
    # o_ref  : (CV, HW_t)    output block (written on the last THW step only)
    # m_sc   : (1, HW_t)     running max        (f32)
    # l_sc   : (1, HW_t)     running sum of exp (f32)
    # acc_sc : (CV, HW_t)    unnormalized mem   (f32)
    t = pl.program_id(2)

    @pl.when(t == 0)
    def _init():
        m_sc[...] = jnp.full_like(m_sc, -jnp.inf)
        l_sc[...] = jnp.zeros_like(l_sc)
        acc_sc[...] = jnp.zeros_like(acc_sc)

    ck = qk_ref.shape[0]
    scale = 1.0 / math.sqrt(ck)

    # Scale the small query tile (matches `qk / sqrt(CK)` in the reference).
    qk = qk_ref[...] * jnp.asarray(scale, dtype=qk_ref.dtype)       # (CK, HW_t)

    # Scores for this THW chunk: (THW_t, HW_t), f32 accumulation on the MXU.
    s = jnp.dot(mk_ref[...], qk, preferred_element_type=jnp.float32)

    # ---- online softmax over the THW axis (axis 0) ----
    m_prev = m_sc[...]                                              # (1, HW_t)
    m_new = jnp.maximum(m_prev, jnp.max(s, axis=0, keepdims=True))
    alpha = jnp.exp(m_prev - m_new)                                 # (1, HW_t)
    e = jnp.exp(s - m_new)                                          # (THW_t, HW_t) f32

    l_sc[...] = alpha * l_sc[...] + jnp.sum(e, axis=0, keepdims=True)

    # Unnormalized weighted values: acc += mv_chunk @ exp_chunk.  Feed MXU
    # operands in the input dtype (bf16 stays bf16); accumulate in f32.
    contrib = jnp.dot(mv_ref[...], e.astype(mv_ref.dtype),
                      preferred_element_type=jnp.float32)           # (CV, HW_t)
    acc_sc[...] = alpha * acc_sc[...] + contrib
    m_sc[...] = m_new

    @pl.when(t == pl.num_programs(2) - 1)
    def _finalize():
        # Fold softmax normalization into the small (CV, HW_t) output block.
        inv_l = pl.reciprocal(l_sc[...], approx=False)              # (1, HW_t)
        o_ref[...] = (acc_sc[...] * inv_l).astype(o_ref.dtype)


def _pick_tile(n, candidates):
    for c in candidates:
        if n % c == 0:
            return c
    return n  # fall back to the full (untiled) extent


def memory_reader(mk, mv, qk, qv, *, thw_tile=None, hw_tile=None):
    """JAX/Pallas equivalent of MemoryReader.forward.

    mk: (B, CK, T, H, W), mv: (B, CV, T, H, W),
    qk: (B, CK, H, W),    qv: (B, CVQ, H, W)
    returns: (B, CV + CVQ, H, W)
    """
    B, CK, T, H, W = mk.shape
    _, CV, _, _, _ = mv.shape
    _, CVQ, _, _ = qv.shape
    THW = T * H * W
    HW = H * W

    # Pre-transpose mk so the CK contraction is the minor axis of the MXU LHS.
    mk_t = jnp.transpose(mk.reshape(B, CK, THW), (0, 2, 1))         # (B, THW, CK)
    mv_f = mv.reshape(B, CV, THW)
    qk_f = qk.reshape(B, CK, HW)

    # VMEM-bounded tile sizes (score block <= 512 x 512 f32 ~ 1 MB).
    if thw_tile is None:
        thw_tile = _pick_tile(THW, (512, 256, 128))
    if hw_tile is None:
        hw_tile = _pick_tile(HW, (512, 256, 128))
    assert THW % thw_tile == 0 and HW % hw_tile == 0

    grid = (B, HW // hw_tile, THW // thw_tile)

    in_itemsize = jnp.dtype(mk.dtype).itemsize
    out_itemsize = jnp.dtype(mv.dtype).itemsize
    cost = pl.CostEstimate(
        flops=2 * B * THW * HW * (CK + CV),
        transcendentals=B * THW * HW,
        bytes_accessed=(mk_t.size + mv_f.size + qk_f.size) * in_itemsize
        + B * CV * HW * out_itemsize,
    )

    mem = pl.pallas_call(
        _memory_reader_kernel,
        out_shape=jax.ShapeDtypeStruct((B, CV, HW), mv.dtype),
        grid_spec=pltpu.PrefetchScalarGridSpec(
            num_scalar_prefetch=0,
            grid=grid,
            in_specs=[
                pl.BlockSpec((None, thw_tile, CK), lambda b, h, t: (b, t, 0)),  # mk_t
                pl.BlockSpec((None, CK, hw_tile), lambda b, h, t: (b, 0, h)),   # qk
                pl.BlockSpec((None, CV, thw_tile), lambda b, h, t: (b, 0, t)),  # mv
            ],
            out_specs=pl.BlockSpec((None, CV, hw_tile), lambda b, h, t: (b, 0, h)),
            scratch_shapes=[
                pltpu.VMEM((1, hw_tile), jnp.float32),    # running max
                pltpu.VMEM((1, hw_tile), jnp.float32),    # running sum
                pltpu.VMEM((CV, hw_tile), jnp.float32),   # unnormalized accumulator
            ],
        ),
        compiler_params=pltpu.CompilerParams(
            dimension_semantics=("parallel", "parallel", "arbitrary"),
        ),
        cost_estimate=cost,
    )(mk_t, qk_f, mv_f)

    # qv is a pure passthrough: concat in the wrapper instead of copying it
    # through the kernel (saves an HBM round trip and avoids partial-sublane
    # stores when CV is not a multiple of 8).
    return jnp.concatenate([mem.reshape(B, CV, H, W), qv], axis=1)


def _memory_reader_ref(mk, mv, qk, qv):
    """Pure-JAX reference mirroring the PyTorch forward exactly."""
    B, CK, T, H, W = mk.shape
    _, CV, _, _, _ = mv.shape
    mi = jnp.transpose(mk.reshape(B, CK, T * H * W), (0, 2, 1))     # (B, THW, CK)
    qi = qk.reshape(B, CK, H * W) / math.sqrt(CK)                   # (B, CK, HW)
    affinity = jnp.einsum("btc,bch->bth", mi, qi)                   # (B, THW, HW)
    affinity = jax.nn.softmax(affinity, axis=1)
    mv_f = mv.reshape(B, CV, T * H * W)
    mem = jnp.einsum("bct,bth->bch", mv_f, affinity).reshape(B, CV, H, W)
    return jnp.concatenate([mem, qv], axis=1)


if __name__ == "__main__":
    key = jax.random.PRNGKey(0)
    k1, k2, k3, k4 = jax.random.split(key, 4)

    # Small but tiling-exercising shapes: THW = 1024 -> 2 online-softmax steps,
    # HW = 256 -> one lane-dense output tile.
    B, CK, CV, T, H, W = 2, 8, 8, 4, 16, 16
    mk = jax.random.normal(k1, (B, CK, T, H, W), dtype=jnp.float32)
    mv = jax.random.normal(k2, (B, CV, T, H, W), dtype=jnp.float32)
    qk = jax.random.normal(k3, (B, CK, H, W), dtype=jnp.float32)
    qv = jax.random.normal(k4, (B, CV, H, W), dtype=jnp.float32)

    out = memory_reader(mk, mv, qk, qv)
    out = jax.block_until_ready(out)

    ref = jax.block_until_ready(_memory_reader_ref(mk, mv, qk, qv))
    assert out.shape == (B, CV + CV, H, W), out.shape
    assert jnp.allclose(out, ref, atol=2e-4, rtol=1e-3), "mismatch vs reference"

    print("KERNEL_OK")
</pallas_src>

<mosaic_0001>
module attributes {stable_mosaic.version = 11 : i64} {
  func.func @_memory_reader_kernel(%arg0: i32, %arg1: i32, %arg2: i32, %arg3: memref<1x512x8xf32, #tpu.memory_space<vmem>>, %arg4: memref<1x8x256xf32, #tpu.memory_space<vmem>>, %arg5: memref<1x8x512xf32, #tpu.memory_space<vmem>>, %arg6: memref<1x8x256xf32, #tpu.memory_space<vmem>>, %arg7: memref<1x256xf32, #tpu.memory_space<vmem>>, %arg8: memref<1x256xf32, #tpu.memory_space<vmem>>, %arg9: memref<8x256xf32, #tpu.memory_space<vmem>>) attributes {dimension_semantics = [#tpu.dimension_semantics<parallel>, #tpu.dimension_semantics<parallel>, #tpu.dimension_semantics<arbitrary>], iteration_bounds = array<i64: 2, 1, 2>, scalar_prefetch = 0 : i64, scratch_operands = 3 : i64, tpu.core_type = #tpu.core_type<tc>, window_params = [{transform_indices = @transform_0, window_bounds = array<i64: 1, 512, 8>}, {transform_indices = @transform_1, window_bounds = array<i64: 1, 8, 256>}, {transform_indices = @transform_2, window_bounds = array<i64: 1, 8, 512>}, {transform_indices = @transform_3, window_bounds = array<i64: 1, 8, 256>}]} {
    %c0_i32 = arith.constant 0 : i32
    %0 = arith.cmpi eq, %arg2, %c0_i32 : i32
    %1 = arith.extui %0 : i1 to i32
    %c0_i32_0 = arith.constant 0 : i32
    %2 = arith.cmpi ne, %1, %c0_i32_0 : i32
    scf.if %2 {
      %cst_26 = arith.constant 0xFF800000 : f32
      %37 = vector.broadcast %cst_26 : f32 to vector<1x256xf32>
      %c0_27 = arith.constant 0 : index
      %c0_28 = arith.constant 0 : index
      %38 = vector.load %arg7[%c0_27, %c0_28] : memref<1x256xf32, #tpu.memory_space<vmem>>, vector<1x256xf32>
      tpu.vector_store %arg7[%c0_27, %c0_28], %37 {strides = array<i32>} : memref<1x256xf32, #tpu.memory_space<vmem>>, vector<1x256xf32>,
      %cst_29 = arith.constant 0.000000e+00 : f32
      %39 = vector.broadcast %cst_29 : f32 to vector<1x256xf32>
      %c0_30 = arith.constant 0 : index
      %c0_31 = arith.constant 0 : index
      %40 = vector.load %arg8[%c0_30, %c0_31] : memref<1x256xf32, #tpu.memory_space<vmem>>, vector<1x256xf32>
      tpu.vector_store %arg8[%c0_30, %c0_31], %39 {strides = array<i32>} : memref<1x256xf32, #tpu.memory_space<vmem>>, vector<1x256xf32>,
      %cst_32 = arith.constant 0.000000e+00 : f32
      %41 = vector.broadcast %cst_32 : f32 to vector<8x256xf32>
      %c0_33 = arith.constant 0 : index
      %c0_34 = arith.constant 0 : index
      %42 = vector.load %arg9[%c0_33, %c0_34] : memref<8x256xf32, #tpu.memory_space<vmem>>, vector<8x256xf32>
      tpu.vector_store %arg9[%c0_33, %c0_34], %41 {strides = array<i32>} : memref<8x256xf32, #tpu.memory_space<vmem>>, vector<8x256xf32>,
    } else {
    }
    %c0 = arith.constant 0 : index
    %c0_1 = arith.constant 0 : index
    %c0_2 = arith.constant 0 : index
    %3 = vector.load %arg4[%c0, %c0_1, %c0_2] : memref<1x8x256xf32, #tpu.memory_space<vmem>>, vector<1x8x256xf32>
    %4 = vector.shape_cast %3 : vector<1x8x256xf32> to vector<8x256xf32>
    %cst = arith.constant 0.353553385 : f32
    %5 = vector.broadcast %cst : f32 to vector<8x256xf32>
    %6 = arith.mulf %4, %5 : vector<8x256xf32>
    %c0_3 = arith.constant 0 : index
    %c0_4 = arith.constant 0 : index
    %c0_5 = arith.constant 0 : index
    %7 = vector.load %arg3[%c0_3, %c0_4, %c0_5] : memref<1x512x8xf32, #tpu.memory_space<vmem>>, vector<1x512x8xf32>
    %8 = vector.shape_cast %7 : vector<1x512x8xf32> to vector<512x8xf32>
    %cst_6 = arith.constant dense<0.000000e+00> : vector<512x256xf32>
    %9 = tpu.matmul %8, %6, %cst_6 {dimension_numbers = #tpu.dot_dimension_numbers<[1], [0], [0], [1], [0, 0, 1, 1], [], []>} : vector<512x8xf32>, vector<8x256xf32>, vector<512x256xf32> -> vector<512x256xf32>
    %c0_7 = arith.constant 0 : index
    %c0_8 = arith.constant 0 : index
    %10 = vector.load %arg7[%c0_7, %c0_8] : memref<1x256xf32, #tpu.memory_space<vmem>>, vector<1x256xf32>
    %cst_9 = arith.constant dense<0xFF800000> : vector<256xf32>
    %11 = vector.multi_reduction <maximumf>, %9, %cst_9 [0] : vector<512x256xf32> to vector<256xf32>
    %12 = vector.shape_cast %11 : vector<256xf32> to vector<1x256xf32>
    %13 = arith.maximumf %10, %12 : vector<1x256xf32>
    %14 = arith.subf %10, %13 : vector<1x256xf32>
    %15 = math.exp %14 : vector<1x256xf32>
    %16 = vector.broadcast %13 : vector<1x256xf32> to vector<512x256xf32>
    %17 = arith.subf %9, %16 : vector<512x256xf32>
    %18 = math.exp %17 : vector<512x256xf32>
    %c0_10 = arith.constant 0 : index
    %c0_11 = arith.constant 0 : index
    %19 = vector.load %arg8[%c0_10, %c0_11] : memref<1x256xf32, #tpu.memory_space<vmem>>, vector<1x256xf32>
    %20 = arith.mulf %15, %19 : vector<1x256xf32>
    %cst_12 = arith.constant dense<0.000000e+00> : vector<256xf32>
    %21 = vector.multi_reduction <add>, %18, %cst_12 [0] : vector<512x256xf32> to vector<256xf32>
    %22 = vector.shape_cast %21 : vector<256xf32> to vector<1x256xf32>
    %23 = arith.addf %20, %22 : vector<1x256xf32>
    %c0_13 = arith.constant 0 : index
    %c0_14 = arith.constant 0 : index
    %24 = vector.load %arg8[%c0_13, %c0_14] : memref<1x256xf32, #tpu.memory_space<vmem>>, vector<1x256xf32>
    tpu.vector_store %arg8[%c0_13, %c0_14], %23 {strides = array<i32>} : memref<1x256xf32, #tpu.memory_space<vmem>>, vector<1x256xf32>,
    %c0_15 = arith.constant 0 : index
    %c0_16 = arith.constant 0 : index
    %c0_17 = arith.constant 0 : index
    %25 = vector.load %arg5[%c0_15, %c0_16, %c0_17] : memref<1x8x512xf32, #tpu.memory_space<vmem>>, vector<1x8x512xf32>
    %26 = vector.shape_cast %25 : vector<1x8x512xf32> to vector<8x512xf32>
    %cst_18 = arith.constant dense<0.000000e+00> : vector<8x256xf32>
    %27 = tpu.matmul %26, %18, %cst_18 {dimension_numbers = #tpu.dot_dimension_numbers<[1], [0], [0], [1], [0, 0, 1, 1], [], []>} : vector<8x512xf32>, vector<512x256xf32>, vector<8x256xf32> -> vector<8x256xf32>
    %c0_19 = arith.constant 0 : index
    %c0_20 = arith.constant 0 : index
    %28 = vector.load %arg9[%c0_19, %c0_20] : memref<8x256xf32, #tpu.memory_space<vmem>>, vector<8x256xf32>
    %29 = vector.broadcast %15 : vector<1x256xf32> to vector<8x256xf32>
    %30 = arith.mulf %29, %28 : vector<8x256xf32>
    %31 = arith.addf %30, %27 : vector<8x256xf32>
    %c0_21 = arith.constant 0 : index
    %c0_22 = arith.constant 0 : index
    %32 = vector.load %arg9[%c0_21, %c0_22] : memref<8x256xf32, #tpu.memory_space<vmem>>, vector<8x256xf32>
    tpu.vector_store %arg9[%c0_21, %c0_22], %31 {strides = array<i32>} : memref<8x256xf32, #tpu.memory_space<vmem>>, vector<8x256xf32>,
    %c0_23 = arith.constant 0 : index
    %c0_24 = arith.constant 0 : index
    %33 = vector.load %arg7[%c0_23, %c0_24] : memref<1x256xf32, #tpu.memory_space<vmem>>, vector<1x256xf32>
    tpu.vector_store %arg7[%c0_23, %c0_24], %13 {strides = array<i32>} : memref<1x256xf32, #tpu.memory_space<vmem>>, vector<1x256xf32>,
    %c1_i32 = arith.constant 1 : i32
    %34 = arith.cmpi eq, %arg2, %c1_i32 : i32
    %35 = arith.extui %34 : i1 to i32
    %c0_i32_25 = arith.constant 0 : i32
    %36 = arith.cmpi ne, %35, %c0_i32_25 : i32
    scf.if %36 {
      %c0_26 = arith.constant 0 : index
      %c0_27 = arith.constant 0 : index
      %37 = vector.load %arg8[%c0_26, %c0_27] : memref<1x256xf32, #tpu.memory_space<vmem>>, vector<1x256xf32>
      %38 = tpu.reciprocal %37 : vector<1x256xf32> -> vector<1x256xf32>
      %c0_28 = arith.constant 0 : index
      %c0_29 = arith.constant 0 : index
      %39 = vector.load %arg9[%c0_28, %c0_29] : memref<8x256xf32, #tpu.memory_space<vmem>>, vector<8x256xf32>
      %40 = vector.broadcast %38 : vector<1x256xf32> to vector<8x256xf32>
      %41 = arith.mulf %39, %40 : vector<8x256xf32>
      %c0_30 = arith.constant 0 : index
      %c0_31 = arith.constant 0 : index
      %c0_32 = arith.constant 0 : index
      %42 = vector.load %arg6[%c0_30, %c0_31, %c0_32] : memref<1x8x256xf32, #tpu.memory_space<vmem>>, vector<1x8x256xf32>
      %43 = vector.shape_cast %42 : vector<1x8x256xf32> to vector<8x256xf32>
      %44 = vector.shape_cast %41 : vector<8x256xf32> to vector<1x8x256xf32>
      tpu.vector_store %arg6[%c0_30, %c0_31, %c0_32], %44 {strides = array<i32>} : memref<1x8x256xf32, #tpu.memory_space<vmem>>, vector<1x8x256xf32>,
    } else {
    }
    return
  }
  func.func @transform_0(%arg0: i32, %arg1: i32, %arg2: i32) -> (i32, i32, i32) {
    %c0_i32 = arith.constant 0 : i32
    %c0_i32_0 = arith.constant 0 : i32
    return %arg0, %arg2, %c0_i32 : i32, i32, i32
  }
  func.func @transform_1(%arg0: i32, %arg1: i32, %arg2: i32) -> (i32, i32, i32) {
    %c0_i32 = arith.constant 0 : i32
    %c0_i32_0 = arith.constant 0 : i32
    return %arg0, %c0_i32, %arg1 : i32, i32, i32
  }
  func.func @transform_2(%arg0: i32, %arg1: i32, %arg2: i32) -> (i32, i32, i32) {
    %c0_i32 = arith.constant 0 : i32
    %c0_i32_0 = arith.constant 0 : i32
    return %arg0, %c0_i32, %arg2 : i32, i32, i32
  }
  func.func @transform_3(%arg0: i32, %arg1: i32, %arg2: i32) -> (i32, i32, i32) {
    %c0_i32 = arith.constant 0 : i32
    %c0_i32_0 = arith.constant 0 : i32
    return %arg0, %c0_i32, %arg1 : i32, i32, i32
  }
}

</mosaic_0001>

<llo_original>
// kernel: tpu_custom_call.1
$region0: #{tpu_custom_call.1}
  #allocation0 [shape = 'u32[]', space=smem, size = 0x4, offset = 0x4, fixed_abs, tag = 'smem constant byte address 0x4 - core index']
  #allocation1 [shape = 'u32[144,128]{1,0:T(1,128)}', space=vmem, size = 0x12000, scoped, tag = 'internal scratch']
  #allocation2 [shape = 'f32[1,256]{1,0:T(1,128)}', space=vmem, size = 0x400, scoped, tag = 'scratch operand']
  #allocation3 [shape = 'f32[1,256]{1,0:T(1,128)}', space=vmem, size = 0x400, scoped, tag = 'scratch operand']
  #allocation4 [shape = 'f32[8,256]{1,0:T(8,128)}', space=vmem, size = 0x2000, scoped, tag = 'scratch operand']
  %s0 = inlined_call_operand.vmem [shape: f32[2,1024,8], index: 0, kind: input, shape index: {}]
  %s1 = inlined_call_operand.vmem [shape: f32[2,8,256], index: 1, kind: input, shape index: {}]
  %s2 = inlined_call_operand.vmem [shape: f32[2,8,1024], index: 2, kind: input, shape index: {}]
  %s3 = inlined_call_operand.hbm [shape: f32[2,8,256], index: 3, kind: output, shape index: {}]
  %s4 = sld [smem:[#allocation0]]
  $region53: #{tpu_custom_call.1} parent=0
    _
  %s6 = ssub.s32 1, %s4
  %s7 = scalar_select 0, %s6, %s4
  $region1: #{tpu_custom_call.1} parent=0
    #allocation5 [shape = 'u8[16384]{0}', space=vmem, size = 0x4000, scoped, tag = 'output window, operand 0']
    #allocation6 [shape = 's32[2]{0}', space=sflag, size = 0x8, scoped, tag = 'scoped memory for tpu_custom_call.1']
    %8 = vsyncpa [#allocation6], 0
    %s9 = scalar_lea.sflag [#allocation6], 1
    %10 = vsyncpa %s9, 0
    loop: start=0, step=1, limit=6
    $region2: #{tpu_custom_call.1} parent=1 // loop_pre_header
      _
    $region3: #{tpu_custom_call.1} parent=1 // loop_header
      %s12 = sphi 0, %s16
      %p13 = scmp.ge.s32.totalorder %s12, 6
      %s19 = sphi 0, %s38
      %s20 = sphi 0, %s34
      %s21 = sphi 0, %s30
      %s22 = sphi 0, %s19
      %s23 = sphi 0, %s20
      %s24 = sphi 0, %s21
      %s25 = sphi 0, %s22
      %s26 = sphi 0, %s23
      %s27 = sphi 0, %s24
      %s43 = sphi 0, %s45
      %s46 = sphi 0, %s43
      %s47 = sphi 0, %s46
      %s63 = sphi 0, %s47
      %s71 = sphi 0, %s73
      %s74 = sphi 0, %s71
      %s75 = sphi 0, %s74
      %s91 = sphi 0, %s75
      %s99 = sphi 0, %s101
      %s102 = sphi 0, %s99
      %s103 = sphi 0, %s102
      %s119 = sphi 0, %s103
      %s127 = sphi 0, %s129
      %s130 = sphi 0, %s127
      %s131 = sphi 0, %s130
      %s147 = sphi 0, %s131
    $region4: #{tpu_custom_call.1} parent=1 // loop_header_branch
      %15 = sbr.rel (%p13) target = $region8
    $region5: #{tpu_custom_call.1} parent=1 // loop_body
      %s17 = ssub.s32 %s12, 1
      %s18 = ssub.s32 %s12, 2
      %s28 = sadd.s32 1, %s21
      %p29 = scmp.ge.s32.totalorder %s28, 2
      %s30 = scalar_select %p29, 0, %s28
      %s31 = sadd.s32 1, %s20
      %s32 = scalar_select %p29, %s31, %s20
      %p33 = scmp.ge.s32.totalorder %s32, 1
      %s34 = scalar_select %p33, 0, %s32
      %s35 = sadd.s32 1, %s19
      %s36 = scalar_select %p33, %s35, %s19
      %p37 = scmp.ge.s32.totalorder %s36, 2
      %s38 = scalar_select %p37, 0, %s36
      %s39 = ssub.s32 %s19, %s38
      %s40 = ssub.s32 %s21, %s30
      %s41 = sor.u32 %s39, %s40
      %p42 = scmp.eq.s32.totalorder %s41, 0
      %s44 = sadd.s32 %s43, 1
      %s45 = scalar_select %p42, %s43, %s44
      %p48 = pneg %p42
      %p49 = scmp.eq.s32.totalorder %s12, 3
      %p50 = por %p48, %p49
      %p51 = scmp.ne.s32.totalorder %s43, %s46
      %p52 = scmp.eq.s32.totalorder %s12, 0
      %p53 = por %p51, %p52
      %p54 = scmp.ne.s32.totalorder %s43, %s46
      %p55 = scmp.eq.s32.totalorder %s17, 3
      %p56 = por %p54, %p55
      %p57 = scmp.ne.s32.totalorder %s46, %s47
      %p58 = scmp.eq.s32.totalorder %s17, 0
      %p59 = por %p57, %p58
      %p60 = scmp.ne.s32.totalorder %s46, %s47
      %p61 = scmp.eq.s32.totalorder %s18, 3
      %p62 = por %p60, %p61
      %p64 = scmp.ne.s32.totalorder %s47, %s63
      %p65 = scmp.eq.s32.totalorder %s18, 0
      %p66 = por %p64, %p65
      %s67 = ssub.s32 %s19, %s38
      %s68 = ssub.s32 %s20, %s34
      %s69 = sor.u32 %s67, %s68
      %p70 = scmp.eq.s32.totalorder %s69, 0
      %s72 = sadd.s32 %s71, 1
      %s73 = scalar_select %p70, %s71, %s72
      %p76 = pneg %p70
      %p77 = scmp.eq.s32.totalorder %s12, 3
      %p78 = por %p76, %p77
      %p79 = scmp.ne.s32.totalorder %s71, %s74
      %p80 = scmp.eq.s32.totalorder %s12, 0
      %p81 = por %p79, %p80
      %p82 = scmp.ne.s32.totalorder %s71, %s74
      %p83 = scmp.eq.s32.totalorder %s17, 3
      %p84 = por %p82, %p83
      %p85 = scmp.ne.s32.totalorder %s74, %s75
      %p86 = scmp.eq.s32.totalorder %s17, 0
      %p87 = por %p85, %p86
      %p88 = scmp.ne.s32.totalorder %s74, %s75
      %p89 = scmp.eq.s32.totalorder %s18, 3
      %p90 = por %p88, %p89
      %p92 = scmp.ne.s32.totalorder %s75, %s91
      %p93 = scmp.eq.s32.totalorder %s18, 0
      %p94 = por %p92, %p93
      %s95 = ssub.s32 %s19, %s38
      %s96 = ssub.s32 %s21, %s30
      %s97 = sor.u32 %s95, %s96
      %p98 = scmp.eq.s32.totalorder %s97, 0
      %s100 = sadd.s32 %s99, 1
      %s101 = scalar_select %p98, %s99, %s100
      %p104 = pneg %p98
      %p105 = scmp.eq.s32.totalorder %s12, 3
      %p106 = por %p104, %p105
      %p107 = scmp.ne.s32.totalorder %s99, %s102
      %p108 = scmp.eq.s32.totalorder %s12, 0
      %p109 = por %p107, %p108
      %p110 = scmp.ne.s32.totalorder %s99, %s102
      %p111 = scmp.eq.s32.totalorder %s17, 3
      %p112 = por %p110, %p111
      %p113 = scmp.ne.s32.totalorder %s102, %s103
      %p114 = scmp.eq.s32.totalorder %s17, 0
      %p115 = por %p113, %p114
      %p116 = scmp.ne.s32.totalorder %s102, %s103
      %p117 = scmp.eq.s32.totalorder %s18, 3
      %p118 = por %p116, %p117
      %p120 = scmp.ne.s32.totalorder %s103, %s119
      %p121 = scmp.eq.s32.totalorder %s18, 0
      %p122 = por %p120, %p121
      %s123 = ssub.s32 %s19, %s38
      %s124 = ssub.s32 %s20, %s34
      %s125 = sor.u32 %s123, %s124
      %p126 = scmp.eq.s32.totalorder %s125, 0
      %s128 = sadd.s32 %s127, 1
      %s129 = scalar_select %p126, %s127, %s128
      %p132 = pneg %p126
      %p133 = scmp.eq.s32.totalorder %s12, 3
      %p134 = por %p132, %p133
      %p135 = scmp.ne.s32.totalorder %s127, %s130
      %p136 = scmp.eq.s32.totalorder %s12, 0
      %p137 = por %p135, %p136
      %p138 = scmp.ne.s32.totalorder %s127, %s130
      %p139 = scmp.eq.s32.totalorder %s17, 3
      %p140 = por %p138, %p139
      %p141 = scmp.ne.s32.totalorder %s130, %s131
      %p142 = scmp.eq.s32.totalorder %s17, 0
      %p143 = por %p141, %p142
      %p144 = scmp.ne.s32.totalorder %s130, %s131
      %p145 = scmp.eq.s32.totalorder %s18, 3
      %p146 = por %p144, %p145
      %p148 = scmp.ne.s32.totalorder %s131, %s147
      %p149 = scmp.eq.s32.totalorder %s18, 0
      %p150 = por %p148, %p149
      %p151 = scmp.le.s32.totalorder 1, %s12
      %p152 = scmp.lt.s32.totalorder %s12, 5
      %p153 = pnand %p151, %p152
      %p154 = pneg %p153
      // Predicated region
      $region9: #{tpu_custom_call.1} parent=5 // pred_check
        _
      $region10: #{tpu_custom_call.1} parent=5 // pred_check_branch
        %156 = sbr.rel (%p153) target = $region12
      $region11: #{tpu_custom_call.1} parent=5 // pred_region
        %s157 = ssub.s32 %s12, 1
      $region12: #{tpu_custom_call.1} parent=5 // pred_fallthru
        _
      %p158 = scmp.lt.s32.totalorder %s12, 4
      // Predicated region
      $region13: #{tpu_custom_call.1} parent=5 // pred_check
        %p159 = pneg %p158
      $region14: #{tpu_custom_call.1} parent=5 // pred_check_branch
        %161 = sbr.rel (%p159) target = $region16
      $region15: #{tpu_custom_call.1} parent=5 // pred_region
        // Predicated region
        $region17: #{tpu_custom_call.1} parent=15 // pred_check
          %p162 = pneg %p53
        $region18: #{tpu_custom_call.1} parent=15 // pred_check_branch
          %164 = sbr.rel (%p162) target = $region20
        $region19: #{tpu_custom_call.1} parent=15 // pred_region
          %s165 = smul.u32 64, %s21
          %p166 = scmp.lt.s32.totalorder %s19, 1
          %s167 = scalar_select %p166, %s19, 1
          %p168 = scmp.lt.s32.totalorder %s165, 127
          %s169 = scalar_select %p168, %s165, 127
          %s170 = smul.addr %s167, 128
          %s171 = sadd.s32 %s169, %s170
          %s172 = smul.addr %s171, 8
          %s173 = scalar_lea.vmem %s0, %s172
          %s174 = smul.u32 64, %s21
        $region20: #{tpu_custom_call.1} parent=15 // pred_fallthru
          _
        // Predicated region
        $region21: #{tpu_custom_call.1} parent=15 // pred_check
          %p175 = pneg %p81
        $region22: #{tpu_custom_call.1} parent=15 // pred_check_branch
          %177 = sbr.rel (%p175) target = $region24
        $region23: #{tpu_custom_call.1} parent=15 // pred_region
          %s178 = smul.u32 2, %s20
          %p179 = scmp.lt.s32.totalorder %s19, 1
          %s180 = scalar_select %p179, %s19, 1
          %p181 = scmp.lt.s32.totalorder %s178, 1
          %s182 = scalar_select %p181, %s178, 1
          %s183 = smul.addr %s180, 2
          %s184 = sadd.s32 %s182, %s183
          %s185 = smul.addr %s184, 8
          %s186 = scalar_lea.vmem %s1, %s185
          %s187 = smul.u32 2, %s20
        $region24: #{tpu_custom_call.1} parent=15 // pred_fallthru
          _
        // Predicated region
        $region25: #{tpu_custom_call.1} parent=15 // pred_check
          %p188 = pneg %p109
        $region26: #{tpu_custom_call.1} parent=15 // pred_check_branch
          %190 = sbr.rel (%p188) target = $region28
        $region27: #{tpu_custom_call.1} parent=15 // pred_region
          %s191 = smul.u32 4, %s21
          %p192 = scmp.lt.s32.totalorder %s19, 1
          %s193 = scalar_select %p192, %s19, 1
          %p194 = scmp.lt.s32.totalorder %s191, 7
          %s195 = scalar_select %p194, %s191, 7
          %s196 = smul.addr %s193, 8
          %s197 = sadd.s32 %s195, %s196
          %s198 = smul.addr %s197, 8
          %s199 = scalar_lea.vmem %s2, %s198
          %s200 = smul.u32 4, %s21
        $region28: #{tpu_custom_call.1} parent=15 // pred_fallthru
          _
      $region16: #{tpu_custom_call.1} parent=5 // pred_fallthru
        _
      %p201 = scmp.le.s32.totalorder 1, %s12
      %p202 = scmp.lt.s32.totalorder %s12, 5
      %p203 = pnand %p201, %p202
      %p204 = pneg %p203
      // Predicated region
      $region29: #{tpu_custom_call.1} parent=5 // pred_check
        _
      $region30: #{tpu_custom_call.1} parent=5 // pred_check_branch
        %206 = sbr.rel (%p203) target = $region32
      $region31: #{tpu_custom_call.1} parent=5 // pred_region
        %s207 = ssub.s32 %s12, 1
        %s208 = smul.u32 64, %s24
        %p209 = scmp.lt.s32.totalorder %s22, 1
        %s210 = scalar_select %p209, %s22, 1
        %p211 = scmp.lt.s32.totalorder %s208, 127
        %s212 = scalar_select %p211, %s208, 127
        %s213 = smul.addr %s210, 128
        %s214 = sadd.s32 %s212, %s213
        %s215 = smul.addr %s214, 8
        %s216 = scalar_lea.vmem %s0, %s215
        %p217 = pneg %p59
        %p218 = pneg %p56
        %s219 = smul.u32 2, %s23
        %p220 = scmp.lt.s32.totalorder %s22, 1
        %s221 = scalar_select %p220, %s22, 1
        %p222 = scmp.lt.s32.totalorder %s219, 1
        %s223 = scalar_select %p222, %s219, 1
        %s224 = smul.addr %s221, 2
        %s225 = sadd.s32 %s223, %s224
        %s226 = smul.addr %s225, 8
        %s227 = scalar_lea.vmem %s1, %s226
        %p228 = pneg %p87
        %p229 = pneg %p84
        %s230 = smul.u32 4, %s24
        %p231 = scmp.lt.s32.totalorder %s22, 1
        %s232 = scalar_select %p231, %s22, 1
        %p233 = scmp.lt.s32.totalorder %s230, 7
        %s234 = scalar_select %p233, %s230, 7
        %s235 = smul.addr %s232, 8
        %s236 = sadd.s32 %s234, %s235
        %s237 = smul.addr %s236, 8
        %s238 = scalar_lea.vmem %s2, %s237
        %p239 = pneg %p115
        %p240 = pneg %p112
        %p241 = pneg %p143
        %p242 = pneg %p140
        %s243 = sand.u32 %s130, 1
        %s244 = scalar_lea.sflag [#allocation6], %s243
        %s245 = sand.u32 %s130, 1
        %s246 = smul.addr %s245, 16
        %s247 = scalar_lea.vmem [#allocation5], %s246
        %s248 = smul.u32 64, %s24
        %p249 = scmp.lt.s32.totalorder %s22, 1
        %s250 = scalar_select %p249, %s22, 1
        %p251 = scmp.lt.s32.totalorder %s248, 127
        %s252 = scalar_select %p251, %s248, 127
        %s253 = smul.addr %s250, 128
        %s254 = sadd.s32 %s252, %s253
        %s255 = smul.addr %s254, 8
        %s256 = scalar_lea.vmem %s0, %s255
        %s257 = smul.u32 64, %s24
        %s258 = smul.u32 2, %s23
        %p259 = scmp.lt.s32.totalorder %s22, 1
        %s260 = scalar_select %p259, %s22, 1
        %p261 = scmp.lt.s32.totalorder %s258, 1
        %s262 = scalar_select %p261, %s258, 1
        %s263 = smul.addr %s260, 2
        %s264 = sadd.s32 %s262, %s263
        %s265 = smul.addr %s264, 8
        %s266 = scalar_lea.vmem %s1, %s265
        %s267 = smul.u32 2, %s23
        %s268 = smul.u32 4, %s24
        %p269 = scmp.lt.s32.totalorder %s22, 1
        %s270 = scalar_select %p269, %s22, 1
        %p271 = scmp.lt.s32.totalorder %s268, 7
        %s272 = scalar_select %p271, %s268, 7
        %s273 = smul.addr %s270, 8
        %s274 = sadd.s32 %s272, %s273
        %s275 = smul.addr %s274, 8
        %s276 = scalar_lea.vmem %s2, %s275
        %s277 = smul.u32 4, %s24
        %s278 = smul.u32 2, %s23
        %p279 = scmp.eq.s32.totalorder %s24, 0
        // Predicated region
        $region33: #{tpu_custom_call.1} parent=31 // pred_check
          %p280 = pneg %p279
        $region34: #{tpu_custom_call.1} parent=31 // pred_check_branch
          %282 = sbr.rel (%p280) target = $region36
        $region35: #{tpu_custom_call.1} parent=31 // pred_region
          %v283 = vlaneseq
          %vm284 = vcmp.ge.s32.totalorder %v283, 0
          %vm285 = vcmp.lt.s32.totalorder %v283, 256
          %vm286 = vmand %vm284, %vm285
          %287 = vst.msk [vmem:[#allocation2] sm:$0x3] %vm286, -inf
          %288 = vst.msk [vmem:[#allocation3] sm:$0x3] %vm286, 0.0
          %289 = vst [vmem:[#allocation4] sm:$0xff] 0.0
          %290 = vst [vmem:[#allocation4 + $0x8] sm:$0xff] 0.0
        $region36: #{tpu_custom_call.1} parent=31 // pred_fallthru
          _
        %v291 = vld [vmem:[%s266] sm:$0xff]
        %v292 = vld [vmem:[%s266 + $0x8] sm:$0xff]
        %v293 = vmul.f32 %v291, 0.35355338
        %v294 = vmul.f32 %v292, 0.35355338
        %v295 = vld [vmem:[%s256] sm:$0xff]
        %v296 = vld [vmem:[%s256 + $0x8] sm:$0xff]
        %v297 = vld [vmem:[%s256 + $0x10] sm:$0xff]
        %v298 = vld [vmem:[%s256 + $0x18] sm:$0xff]
        %v299 = vld [vmem:[%s256 + $0x20] sm:$0xff]
        %v300 = vld [vmem:[%s256 + $0x28] sm:$0xff]
        %v301 = vld [vmem:[%s256 + $0x30] sm:$0xff]
        %v302 = vld [vmem:[%s256 + $0x38] sm:$0xff]
        %v303 = vld [vmem:[%s256 + $0x40] sm:$0xff]
        %v304 = vld [vmem:[%s256 + $0x48] sm:$0xff]
        %v305 = vld [vmem:[%s256 + $0x50] sm:$0xff]
        %v306 = vld [vmem:[%s256 + $0x58] sm:$0xff]
        %v307 = vld [vmem:[%s256 + $0x60] sm:$0xff]
        %v308 = vld [vmem:[%s256 + $0x68] sm:$0xff]
        %v309 = vld [vmem:[%s256 + $0x70] sm:$0xff]
        %v310 = vld [vmem:[%s256 + $0x78] sm:$0xff]
        %v311 = vld [vmem:[%s256 + $0x80] sm:$0xff]
        %v312 = vld [vmem:[%s256 + $0x88] sm:$0xff]
        %v313 = vld [vmem:[%s256 + $0x90] sm:$0xff]
        %v314 = vld [vmem:[%s256 + $0x98] sm:$0xff]
        %v315 = vld [vmem:[%s256 + $0xa0] sm:$0xff]
        %v316 = vld [vmem:[%s256 + $0xa8] sm:$0xff]
        %v317 = vld [vmem:[%s256 + $0xb0] sm:$0xff]
        %v318 = vld [vmem:[%s256 + $0xb8] sm:$0xff]
        %v319 = vld [vmem:[%s256 + $0xc0] sm:$0xff]
        %v320 = vld [vmem:[%s256 + $0xc8] sm:$0xff]
        %v321 = vld [vmem:[%s256 + $0xd0] sm:$0xff]
        %v322 = vld [vmem:[%s256 + $0xd8] sm:$0xff]
        %v323 = vld [vmem:[%s256 + $0xe0] sm:$0xff]
        %v324 = vld [vmem:[%s256 + $0xe8] sm:$0xff]
        %v325 = vld [vmem:[%s256 + $0xf0] sm:$0xff]
        %v326 = vld [vmem:[%s256 + $0xf8] sm:$0xff]
        %v327 = vld [vmem:[%s256 + $0x100] sm:$0xff]
        %v328 = vld [vmem:[%s256 + $0x108] sm:$0xff]
        %v329 = vld [vmem:[%s256 + $0x110] sm:$0xff]
        %v330 = vld [vmem:[%s256 + $0x118] sm:$0xff]
        %v331 = vld [vmem:[%s256 + $0x120] sm:$0xff]
        %v332 = vld [vmem:[%s256 + $0x128] sm:$0xff]
        %v333 = vld [vmem:[%s256 + $0x130] sm:$0xff]
        %v334 = vld [vmem:[%s256 + $0x138] sm:$0xff]
        %v335 = vld [vmem:[%s256 + $0x140] sm:$0xff]
        %v336 = vld [vmem:[%s256 + $0x148] sm:$0xff]
        %v337 = vld [vmem:[%s256 + $0x150] sm:$0xff]
        %v338 = vld [vmem:[%s256 + $0x158] sm:$0xff]
        %v339 = vld [vmem:[%s256 + $0x160] sm:$0xff]
        %v340 = vld [vmem:[%s256 + $0x168] sm:$0xff]
        %v341 = vld [vmem:[%s256 + $0x170] sm:$0xff]
        %v342 = vld [vmem:[%s256 + $0x178] sm:$0xff]
        %v343 = vld [vmem:[%s256 + $0x180] sm:$0xff]
        %v344 = vld [vmem:[%s256 + $0x188] sm:$0xff]
        %v345 = vld [vmem:[%s256 + $0x190] sm:$0xff]
        %v346 = vld [vmem:[%s256 + $0x198] sm:$0xff]
        %v347 = vld [vmem:[%s256 + $0x1a0] sm:$0xff]
        %v348 = vld [vmem:[%s256 + $0x1a8] sm:$0xff]
        %v349 = vld [vmem:[%s256 + $0x1b0] sm:$0xff]
        %v350 = vld [vmem:[%s256 + $0x1b8] sm:$0xff]
        %v351 = vld [vmem:[%s256 + $0x1c0] sm:$0xff]
        %v352 = vld [vmem:[%s256 + $0x1c8] sm:$0xff]
        %v353 = vld [vmem:[%s256 + $0x1d0] sm:$0xff]
        %v354 = vld [vmem:[%s256 + $0x1d8] sm:$0xff]
        %v355 = vld [vmem:[%s256 + $0x1e0] sm:$0xff]
        %v356 = vld [vmem:[%s256 + $0x1e8] sm:$0xff]
        %v357 = vld [vmem:[%s256 + $0x1f0] sm:$0xff]
        %v358 = vld [vmem:[%s256 + $0x1f8] sm:$0xff]
        %vm359 = vcmask 64512
        %v361 = vsel %vm359, %v295, 0
        %v364 = vsel %vm359, %v296, 0
        %v367 = vsel %vm359, %v297, 0
        %v370 = vsel %vm359, %v298, 0
        %v373 = vsel %vm359, %v299, 0
        %v376 = vsel %vm359, %v300, 0
        %v379 = vsel %vm359, %v301, 0
        %v382 = vsel %vm359, %v302, 0
        %v385 = vsel %vm359, %v303, 0
        %v388 = vsel %vm359, %v304, 0
        %v391 = vsel %vm359, %v305, 0
        %v394 = vsel %vm359, %v306, 0
        %v397 = vsel %vm359, %v307, 0
        %v400 = vsel %vm359, %v308, 0
        %v403 = vsel %vm359, %v309, 0
        %v406 = vsel %vm359, %v310, 0
        %v409 = vsel %vm359, %v311, 0
        %v412 = vsel %vm359, %v312, 0
        %v415 = vsel %vm359, %v313, 0
        %v418 = vsel %vm359, %v314, 0
        %v421 = vsel %vm359, %v315, 0
        %v424 = vsel %vm359, %v316, 0
        %v427 = vsel %vm359, %v317, 0
        %v430 = vsel %vm359, %v318, 0
        %v433 = vsel %vm359, %v319, 0
        %v436 = vsel %vm359, %v320, 0
        %v439 = vsel %vm359, %v321, 0
        %v442 = vsel %vm359, %v322, 0
        %v445 = vsel %vm359, %v323, 0
        %v448 = vsel %vm359, %v324, 0
        %v451 = vsel %vm359, %v325, 0
        %v454 = vsel %vm359, %v326, 0
        %v457 = vsel %vm359, %v327, 0
        %v460 = vsel %vm359, %v328, 0
        %v463 = vsel %vm359, %v329, 0
        %v466 = vsel %vm359, %v330, 0
        %v469 = vsel %vm359, %v331, 0
        %v472 = vsel %vm359, %v332, 0
        %v475 = vsel %vm359, %v333, 0
        %v478 = vsel %vm359, %v334, 0
        %v481 = vsel %vm359, %v335, 0
        %v484 = vsel %vm359, %v336, 0
        %v487 = vsel %vm359, %v337, 0
        %v490 = vsel %vm359, %v338, 0
        %v493 = vsel %vm359, %v339, 0
        %v496 = vsel %vm359, %v340, 0
        %v499 = vsel %vm359, %v341, 0
        %v502 = vsel %vm359, %v342, 0
        %v505 = vsel %vm359, %v343, 0
        %v508 = vsel %vm359, %v344, 0
        %v511 = vsel %vm359, %v345, 0
        %v514 = vsel %vm359, %v346, 0
        %v517 = vsel %vm359, %v347, 0
        %v520 = vsel %vm359, %v348, 0
        %v523 = vsel %vm359, %v349, 0
        %v526 = vsel %vm359, %v350, 0
        %v529 = vsel %vm359, %v351, 0
        %v532 = vsel %vm359, %v352, 0
        %v535 = vsel %vm359, %v353, 0
        %v538 = vsel %vm359, %v354, 0
        %v541 = vsel %vm359, %v355, 0
        %v544 = vsel %vm359, %v356, 0
        %v547 = vsel %vm359, %v357, 0
        %v550 = vsel %vm359, %v358, 0
        %552 = vmatprep.subr.mxu0 0.0
        %553 = vmatpush1.msra.mxu0 0.0
        %554 = vmatprep.subr.mxu0 0.0
        %555 = vmatpush1.msra.mxu0 0.0
        %556 = vmatprep.subr.mxu0 0.0
        %557 = vmatpush1.msra.mxu0 0.0
        %558 = vmatprep.subr.mxu0 0.0
        %559 = vmatpush1.msra.mxu0 0.0
        %560 = vmatprep.subr.mxu0 0.0
        %561 = vmatpush1.msra.mxu0 0.0
        %562 = vmatprep.subr.mxu0 0.0
        %563 = vmatpush1.msra.mxu0 0.0
        %564 = vmatprep.subr.mxu0 0.0
        %565 = vmatpush1.msra.mxu0 0.0
        %566 = vmatprep.subr.mxu0 0.0
        %567 = vmatpush1.msra.mxu0 0.0
        %568 = vmatprep.subr.mxu0 0.0
        %569 = vmatpush1.msra.mxu0 0.0
        %570 = vmatprep.subr.mxu0 0.0
        %571 = vmatpush1.msra.mxu0 0.0
        %572 = vmatprep.subr.mxu0 0.0
        %573 = vmatpush1.msra.mxu0 0.0
        %574 = vmatprep.subr.mxu0 0.0
        %575 = vmatpush1.msra.mxu0 0.0
        %576 = vmatprep.subr.mxu0 0.0
        %577 = vmatpush1.msra.mxu0 0.0
        %578 = vmatprep.subr.mxu0 0.0
        %579 = vmatpush1.msra.mxu0 0.0
        %580 = vmatprep.subr.mxu0 0.0
        %581 = vmatpush1.msra.mxu0 0.0
        %582 = vmatprep.subr.mxu0 %v294
        %583 = vmatpush1.msra.mxu0 %v293
        %584 = vmatprep.subr.mxu0 0.0
        %585 = vmatpush2.msra.mxu0 0.0
        %586 = vmatprep.subr.mxu0 0.0
        %587 = vmatpush2.msra.mxu0 0.0
        %588 = vmatprep.subr.mxu0 0.0
        %589 = vmatpush2.msra.mxu0 0.0
        %590 = vmatprep.subr.mxu0 0.0
        %591 = vmatpush2.msra.mxu0 0.0
        %592 = vmatprep.subr.mxu0 0.0
        %593 = vmatpush2.msra.mxu0 0.0
        %594 = vmatprep.subr.mxu0 0.0
        %595 = vmatpush2.msra.mxu0 0.0
        %596 = vmatprep.subr.mxu0 0.0
        %597 = vmatpush2.msra.mxu0 0.0
        %598 = vmatprep.subr.mxu0 0.0
        %599 = vmatpush2.msra.mxu0 0.0
        %600 = vmatprep.subr.mxu0 0.0
        %601 = vmatpush2.msra.mxu0 0.0
        %602 = vmatprep.subr.mxu0 0.0
        %603 = vmatpush2.msra.mxu0 0.0
        %604 = vmatprep.subr.mxu0 0.0
        %605 = vmatpush2.msra.mxu0 0.0
        %606 = vmatprep.subr.mxu0 0.0
        %607 = vmatpush2.msra.mxu0 0.0
        %608 = vmatprep.subr.mxu0 0.0
        %609 = vmatpush2.msra.mxu0 0.0
        %610 = vmatprep.subr.mxu0 0.0
        %611 = vmatpush2.msra.mxu0 0.0
        %612 = vmatprep.subr.mxu0 0.0
        %613 = vmatpush2.msra.mxu0 0.0
        %614 = vmatprep.subr.mxu0 0.0
        %615 = vmatpush2.msra.mxu0 0.0
        %616 = vmatprep.mubr.f32.mxu0 0.0
        %617 = vmatmul.mubr.f32.gmra.mxu0 %v361
        %v618 = vpop.f32.mrf.mxu0
        %v619 = vadd.f32 0.0, %v618
        %v620 = vpop.f32.mrf.mxu0
        %v621 = vadd.f32 0.0, %v620
        %622 = vmatprep.mubr.f32.mxu0 0.0
        %623 = vmatmul.mubr.f32.gmra.mxu0 %v364
        %v624 = vpop.f32.mrf.mxu0
        %v625 = vadd.f32 0.0, %v624
        %v626 = vpop.f32.mrf.mxu0
        %v627 = vadd.f32 0.0, %v626
        %628 = vmatprep.mubr.f32.mxu0 0.0
        %629 = vmatmul.mubr.f32.gmra.mxu0 %v367
        %v630 = vpop.f32.mrf.mxu0
        %v631 = vadd.f32 0.0, %v630
        %v632 = vpop.f32.mrf.mxu0
        %v633 = vadd.f32 0.0, %v632
        %634 = vmatprep.mubr.f32.mxu0 0.0
        %635 = vmatmul.mubr.f32.gmra.mxu0 %v370
        %v636 = vpop.f32.mrf.mxu0
        %v637 = vadd.f32 0.0, %v636
        %v638 = vpop.f32.mrf.mxu0
        %v639 = vadd.f32 0.0, %v638
        %640 = vmatprep.mubr.f32.mxu0 0.0
        %641 = vmatmul.mubr.f32.gmra.mxu0 %v373
        %v642 = vpop.f32.mrf.mxu0
        %v643 = vadd.f32 0.0, %v642
        %v644 = vpop.f32.mrf.mxu0
        %v645 = vadd.f32 0.0, %v644
        %646 = vmatprep.mubr.f32.mxu0 0.0
        %647 = vmatmul.mubr.f32.gmra.mxu0 %v376
        %v648 = vpop.f32.mrf.mxu0
        %v649 = vadd.f32 0.0, %v648
        %v650 = vpop.f32.mrf.mxu0
        %v651 = vadd.f32 0.0, %v650
        %652 = vmatprep.mubr.f32.mxu0 0.0
        %653 = vmatmul.mubr.f32.gmra.mxu0 %v379
        %v654 = vpop.f32.mrf.mxu0
        %v655 = vadd.f32 0.0, %v654
        %v656 = vpop.f32.mrf.mxu0
        %v657 = vadd.f32 0.0, %v656
        %658 = vmatprep.mubr.f32.mxu0 0.0
        %659 = vmatmul.mubr.f32.gmra.mxu0 %v382
        %v660 = vpop.f32.mrf.mxu0
        %v661 = vadd.f32 0.0, %v660
        %v662 = vpop.f32.mrf.mxu0
        %v663 = vadd.f32 0.0, %v662
        %664 = vmatprep.mubr.f32.mxu0 0.0
        %665 = vmatmul.mubr.f32.gmra.mxu0 %v385
        %v666 = vpop.f32.mrf.mxu0
        %v667 = vadd.f32 0.0, %v666
        %v668 = vpop.f32.mrf.mxu0
        %v669 = vadd.f32 0.0, %v668
        %670 = vmatprep.mubr.f32.mxu0 0.0
        %671 = vmatmul.mubr.f32.gmra.mxu0 %v388
        %v672 = vpop.f32.mrf.mxu0
        %v673 = vadd.f32 0.0, %v672
        %v674 = vpop.f32.mrf.mxu0
        %v675 = vadd.f32 0.0, %v674
        %676 = vmatprep.mubr.f32.mxu0 0.0
        %677 = vmatmul.mubr.f32.gmra.mxu0 %v391
        %v678 = vpop.f32.mrf.mxu0
        %v679 = vadd.f32 0.0, %v678
        %v680 = vpop.f32.mrf.mxu0
        %v681 = vadd.f32 0.0, %v680
        %682 = vmatprep.mubr.f32.mxu0 0.0
        %683 = vmatmul.mubr.f32.gmra.mxu0 %v394
        %v684 = vpop.f32.mrf.mxu0
        %v685 = vadd.f32 0.0, %v684
        %v686 = vpop.f32.mrf.mxu0
        %v687 = vadd.f32 0.0, %v686
        %688 = vmatprep.mubr.f32.mxu0 0.0
        %689 = vmatmul.mubr.f32.gmra.mxu0 %v397
        %v690 = vpop.f32.mrf.mxu0
        %v691 = vadd.f32 0.0, %v690
        %v692 = vpop.f32.mrf.mxu0
        %v693 = vadd.f32 0.0, %v692
        %694 = vmatprep.mubr.f32.mxu0 0.0
        %695 = vmatmul.mubr.f32.gmra.mxu0 %v400
        %v696 = vpop.f32.mrf.mxu0
        %v697 = vadd.f32 0.0, %v696
        %v698 = vpop.f32.mrf.mxu0
        %v699 = vadd.f32 0.0, %v698
        %700 = vmatprep.mubr.f32.mxu0 0.0
        %701 = vmatmul.mubr.f32.gmra.mxu0 %v403
        %v702 = vpop.f32.mrf.mxu0
        %v703 = vadd.f32 0.0, %v702
        %v704 = vpop.f32.mrf.mxu0
        %v705 = vadd.f32 0.0, %v704
        %706 = vmatprep.mubr.f32.mxu0 0.0
        %707 = vmatmul.mubr.f32.gmra.mxu0 %v406
        %v708 = vpop.f32.mrf.mxu0
        %v709 = vadd.f32 0.0, %v708
        %v710 = vpop.f32.mrf.mxu0
        %v711 = vadd.f32 0.0, %v710
        %712 = vmatprep.mubr.f32.mxu0 0.0
        %713 = vmatmul.mubr.f32.gmra.mxu0 %v409
        %v714 = vpop.f32.mrf.mxu0
        %v715 = vadd.f32 0.0, %v714
        %v716 = vpop.f32.mrf.mxu0
        %v717 = vadd.f32 0.0, %v716
        %718 = vmatprep.mubr.f32.mxu0 0.0
        %719 = vmatmul.mubr.f32.gmra.mxu0 %v412
        %v720 = vpop.f32.mrf.mxu0
        %v721 = vadd.f32 0.0, %v720
        %v722 = vpop.f32.mrf.mxu0
        %v723 = vadd.f32 0.0, %v722
        %724 = vmatprep.mubr.f32.mxu0 0.0
        %725 = vmatmul.mubr.f32.gmra.mxu0 %v415
        %v726 = vpop.f32.mrf.mxu0
        %v727 = vadd.f32 0.0, %v726
        %v728 = vpop.f32.mrf.mxu0
        %v729 = vadd.f32 0.0, %v728
        %730 = vmatprep.mubr.f32.mxu0 0.0
        %731 = vmatmul.mubr.f32.gmra.mxu0 %v418
        %v732 = vpop.f32.mrf.mxu0
        %v733 = vadd.f32 0.0, %v732
        %v734 = vpop.f32.mrf.mxu0
        %v735 = vadd.f32 0.0, %v734
        %736 = vmatprep.mubr.f32.mxu0 0.0
        %737 = vmatmul.mubr.f32.gmra.mxu0 %v421
        %v738 = vpop.f32.mrf.mxu0
        %v739 = vadd.f32 0.0, %v738
        %v740 = vpop.f32.mrf.mxu0
        %v741 = vadd.f32 0.0, %v740
        %742 = vmatprep.mubr.f32.mxu0 0.0
        %743 = vmatmul.mubr.f32.gmra.mxu0 %v424
        %v744 = vpop.f32.mrf.mxu0
        %v745 = vadd.f32 0.0, %v744
        %v746 = vpop.f32.mrf.mxu0
        %v747 = vadd.f32 0.0, %v746
        %748 = vmatprep.mubr.f32.mxu0 0.0
        %749 = vmatmul.mubr.f32.gmra.mxu0 %v427
        %v750 = vpop.f32.mrf.mxu0
        %v751 = vadd.f32 0.0, %v750
        %v752 = vpop.f32.mrf.mxu0
        %v753 = vadd.f32 0.0, %v752
        %754 = vmatprep.mubr.f32.mxu0 0.0
        %755 = vmatmul.mubr.f32.gmra.mxu0 %v430
        %v756 = vpop.f32.mrf.mxu0
        %v757 = vadd.f32 0.0, %v756
        %v758 = vpop.f32.mrf.mxu0
        %v759 = vadd.f32 0.0, %v758
        %760 = vmatprep.mubr.f32.mxu0 0.0
        %761 = vmatmul.mubr.f32.gmra.mxu0 %v433
        %v762 = vpop.f32.mrf.mxu0
        %v763 = vadd.f32 0.0, %v762
        %v764 = vpop.f32.mrf.mxu0
        %v765 = vadd.f32 0.0, %v764
        %766 = vmatprep.mubr.f32.mxu0 0.0
        %767 = vmatmul.mubr.f32.gmra.mxu0 %v436
        %v768 = vpop.f32.mrf.mxu0
        %v769 = vadd.f32 0.0, %v768
        %v770 = vpop.f32.mrf.mxu0
        %v771 = vadd.f32 0.0, %v770
        %772 = vmatprep.mubr.f32.mxu0 0.0
        %773 = vmatmul.mubr.f32.gmra.mxu0 %v439
        %v774 = vpop.f32.mrf.mxu0
        %v775 = vadd.f32 0.0, %v774
        %v776 = vpop.f32.mrf.mxu0
        %v777 = vadd.f32 0.0, %v776
        %778 = vmatprep.mubr.f32.mxu0 0.0
        %779 = vmatmul.mubr.f32.gmra.mxu0 %v442
        %v780 = vpop.f32.mrf.mxu0
        %v781 = vadd.f32 0.0, %v780
        %v782 = vpop.f32.mrf.mxu0
        %v783 = vadd.f32 0.0, %v782
        %784 = vmatprep.mubr.f32.mxu0 0.0
        %785 = vmatmul.mubr.f32.gmra.mxu0 %v445
        %v786 = vpop.f32.mrf.mxu0
        %v787 = vadd.f32 0.0, %v786
        %v788 = vpop.f32.mrf.mxu0
        %v789 = vadd.f32 0.0, %v788
        %790 = vmatprep.mubr.f32.mxu0 0.0
        %791 = vmatmul.mubr.f32.gmra.mxu0 %v448
        %v792 = vpop.f32.mrf.mxu0
        %v793 = vadd.f32 0.0, %v792
        %v794 = vpop.f32.mrf.mxu0
        %v795 = vadd.f32 0.0, %v794
        %796 = vmatprep.mubr.f32.mxu0 0.0
        %797 = vmatmul.mubr.f32.gmra.mxu0 %v451
        %v798 = vpop.f32.mrf.mxu0
        %v799 = vadd.f32 0.0, %v798
        %v800 = vpop.f32.mrf.mxu0
        %v801 = vadd.f32 0.0, %v800
        %802 = vmatprep.mubr.f32.mxu0 0.0
        %803 = vmatmul.mubr.f32.gmra.mxu0 %v454
        %v804 = vpop.f32.mrf.mxu0
        %v805 = vadd.f32 0.0, %v804
        %v806 = vpop.f32.mrf.mxu0
        %v807 = vadd.f32 0.0, %v806
        %808 = vmatprep.mubr.f32.mxu0 0.0
        %809 = vmatmul.mubr.f32.gmra.mxu0 %v457
        %v810 = vpop.f32.mrf.mxu0
        %v811 = vadd.f32 0.0, %v810
        %v812 = vpop.f32.mrf.mxu0
        %v813 = vadd.f32 0.0, %v812
        %814 = vmatprep.mubr.f32.mxu0 0.0
        %815 = vmatmul.mubr.f32.gmra.mxu0 %v460
        %v816 = vpop.f32.mrf.mxu0
        %v817 = vadd.f32 0.0, %v816
        %v818 = vpop.f32.mrf.mxu0
        %v819 = vadd.f32 0.0, %v818
        %820 = vmatprep.mubr.f32.mxu0 0.0
        %821 = vmatmul.mubr.f32.gmra.mxu0 %v463
        %v822 = vpop.f32.mrf.mxu0
        %v823 = vadd.f32 0.0, %v822
        %v824 = vpop.f32.mrf.mxu0
        %v825 = vadd.f32 0.0, %v824
        %826 = vmatprep.mubr.f32.mxu0 0.0
        %827 = vmatmul.mubr.f32.gmra.mxu0 %v466
        %v828 = vpop.f32.mrf.mxu0
        %v829 = vadd.f32 0.0, %v828
        %v830 = vpop.f32.mrf.mxu0
        %v831 = vadd.f32 0.0, %v830
        %832 = vmatprep.mubr.f32.mxu0 0.0
        %833 = vmatmul.mubr.f32.gmra.mxu0 %v469
        %v834 = vpop.f32.mrf.mxu0
        %v835 = vadd.f32 0.0, %v834
        %v836 = vpop.f32.mrf.mxu0
        %v837 = vadd.f32 0.0, %v836
        %838 = vmatprep.mubr.f32.mxu0 0.0
        %839 = vmatmul.mubr.f32.gmra.mxu0 %v472
        %v840 = vpop.f32.mrf.mxu0
        %v841 = vadd.f32 0.0, %v840
        %v842 = vpop.f32.mrf.mxu0
        %v843 = vadd.f32 0.0, %v842
        %844 = vmatprep.mubr.f32.mxu0 0.0
        %845 = vmatmul.mubr.f32.gmra.mxu0 %v475
        %v846 = vpop.f32.mrf.mxu0
        %v847 = vadd.f32 0.0, %v846
        %v848 = vpop.f32.mrf.mxu0
        %v849 = vadd.f32 0.0, %v848
        %850 = vmatprep.mubr.f32.mxu0 0.0
        %851 = vmatmul.mubr.f32.gmra.mxu0 %v478
        %v852 = vpop.f32.mrf.mxu0
        %v853 = vadd.f32 0.0, %v852
        %v854 = vpop.f32.mrf.mxu0
        %v855 = vadd.f32 0.0, %v854
        %856 = vmatprep.mubr.f32.mxu0 0.0
        %857 = vmatmul.mubr.f32.gmra.mxu0 %v481
        %v858 = vpop.f32.mrf.mxu0
        %v859 = vadd.f32 0.0, %v858
        %v860 = vpop.f32.mrf.mxu0
        %v861 = vadd.f32 0.0, %v860
        %862 = vmatprep.mubr.f32.mxu0 0.0
        %863 = vmatmul.mubr.f32.gmra.mxu0 %v484
        %v864 = vpop.f32.mrf.mxu0
        %v865 = vadd.f32 0.0, %v864
        %v866 = vpop.f32.mrf.mxu0
        %v867 = vadd.f32 0.0, %v866
        %868 = vmatprep.mubr.f32.mxu0 0.0
        %869 = vmatmul.mubr.f32.gmra.mxu0 %v487
        %v870 = vpop.f32.mrf.mxu0
        %v871 = vadd.f32 0.0, %v870
        %v872 = vpop.f32.mrf.mxu0
        %v873 = vadd.f32 0.0, %v872
        %874 = vmatprep.mubr.f32.mxu0 0.0
        %875 = vmatmul.mubr.f32.gmra.mxu0 %v490
        %v876 = vpop.f32.mrf.mxu0
        %v877 = vadd.f32 0.0, %v876
        %v878 = vpop.f32.mrf.mxu0
        %v879 = vadd.f32 0.0, %v878
        %880 = vmatprep.mubr.f32.mxu0 0.0
        %881 = vmatmul.mubr.f32.gmra.mxu0 %v493
        %v882 = vpop.f32.mrf.mxu0
        %v883 = vadd.f32 0.0, %v882
        %v884 = vpop.f32.mrf.mxu0
        %v885 = vadd.f32 0.0, %v884
        %886 = vmatprep.mubr.f32.mxu0 0.0
        %887 = vmatmul.mubr.f32.gmra.mxu0 %v496
        %v888 = vpop.f32.mrf.mxu0
        %v889 = vadd.f32 0.0, %v888
        %v890 = vpop.f32.mrf.mxu0
        %v891 = vadd.f32 0.0, %v890
        %892 = vmatprep.mubr.f32.mxu0 0.0
        %893 = vmatmul.mubr.f32.gmra.mxu0 %v499
        %v894 = vpop.f32.mrf.mxu0
        %v895 = vadd.f32 0.0, %v894
        %v896 = vpop.f32.mrf.mxu0
        %v897 = vadd.f32 0.0, %v896
        %898 = vmatprep.mubr.f32.mxu0 0.0
        %899 = vmatmul.mubr.f32.gmra.mxu0 %v502
        %v900 = vpop.f32.mrf.mxu0
        %v901 = vadd.f32 0.0, %v900
        %v902 = vpop.f32.mrf.mxu0
        %v903 = vadd.f32 0.0, %v902
        %904 = vmatprep.mubr.f32.mxu0 0.0
        %905 = vmatmul.mubr.f32.gmra.mxu0 %v505
        %v906 = vpop.f32.mrf.mxu0
        %v907 = vadd.f32 0.0, %v906
        %v908 = vpop.f32.mrf.mxu0
        %v909 = vadd.f32 0.0, %v908
        %910 = vmatprep.mubr.f32.mxu0 0.0
        %911 = vmatmul.mubr.f32.gmra.mxu0 %v508
        %v912 = vpop.f32.mrf.mxu0
        %v913 = vadd.f32 0.0, %v912
        %v914 = vpop.f32.mrf.mxu0
        %v915 = vadd.f32 0.0, %v914
        %916 = vmatprep.mubr.f32.mxu0 0.0
        %917 = vmatmul.mubr.f32.gmra.mxu0 %v511
        %v918 = vpop.f32.mrf.mxu0
        %v919 = vadd.f32 0.0, %v918
        %v920 = vpop.f32.mrf.mxu0
        %v921 = vadd.f32 0.0, %v920
        %922 = vmatprep.mubr.f32.mxu0 0.0
        %923 = vmatmul.mubr.f32.gmra.mxu0 %v514
        %v924 = vpop.f32.mrf.mxu0
        %v925 = vadd.f32 0.0, %v924
        %v926 = vpop.f32.mrf.mxu0
        %v927 = vadd.f32 0.0, %v926
        %928 = vmatprep.mubr.f32.mxu0 0.0
        %929 = vmatmul.mubr.f32.gmra.mxu0 %v517
        %v930 = vpop.f32.mrf.mxu0
        %v931 = vadd.f32 0.0, %v930
        %v932 = vpop.f32.mrf.mxu0
        %v933 = vadd.f32 0.0, %v932
        %934 = vmatprep.mubr.f32.mxu0 0.0
        %935 = vmatmul.mubr.f32.gmra.mxu0 %v520
        %v936 = vpop.f32.mrf.mxu0
        %v937 = vadd.f32 0.0, %v936
        %v938 = vpop.f32.mrf.mxu0
        %v939 = vadd.f32 0.0, %v938
        %940 = vmatprep.mubr.f32.mxu0 0.0
        %941 = vmatmul.mubr.f32.gmra.mxu0 %v523
        %v942 = vpop.f32.mrf.mxu0
        %v943 = vadd.f32 0.0, %v942
        %v944 = vpop.f32.mrf.mxu0
        %v945 = vadd.f32 0.0, %v944
        %946 = vmatprep.mubr.f32.mxu0 0.0
        %947 = vmatmul.mubr.f32.gmra.mxu0 %v526
        %v948 = vpop.f32.mrf.mxu0
        %v949 = vadd.f32 0.0, %v948
        %v950 = vpop.f32.mrf.mxu0
        %v951 = vadd.f32 0.0, %v950
        %952 = vmatprep.mubr.f32.mxu0 0.0
        %953 = vmatmul.mubr.f32.gmra.mxu0 %v529
        %v954 = vpop.f32.mrf.mxu0
        %v955 = vadd.f32 0.0, %v954
        %v956 = vpop.f32.mrf.mxu0
        %v957 = vadd.f32 0.0, %v956
        %958 = vmatprep.mubr.f32.mxu0 0.0
        %959 = vmatmul.mubr.f32.gmra.mxu0 %v532
        %v960 = vpop.f32.mrf.mxu0
        %v961 = vadd.f32 0.0, %v960
        %v962 = vpop.f32.mrf.mxu0
        %v963 = vadd.f32 0.0, %v962
        %964 = vmatprep.mubr.f32.mxu0 0.0
        %965 = vmatmul.mubr.f32.gmra.mxu0 %v535
        %v966 = vpop.f32.mrf.mxu0
        %v967 = vadd.f32 0.0, %v966
        %v968 = vpop.f32.mrf.mxu0
        %v969 = vadd.f32 0.0, %v968
        %970 = vmatprep.mubr.f32.mxu0 0.0
        %971 = vmatmul.mubr.f32.gmra.mxu0 %v538
        %v972 = vpop.f32.mrf.mxu0
        %v973 = vadd.f32 0.0, %v972
        %v974 = vpop.f32.mrf.mxu0
        %v975 = vadd.f32 0.0, %v974
        %976 = vmatprep.mubr.f32.mxu0 0.0
        %977 = vmatmul.mubr.f32.gmra.mxu0 %v541
        %v978 = vpop.f32.mrf.mxu0
        %v979 = vadd.f32 0.0, %v978
        %v980 = vpop.f32.mrf.mxu0
        %v981 = vadd.f32 0.0, %v980
        %982 = vmatprep.mubr.f32.mxu0 0.0
        %983 = vmatmul.mubr.f32.gmra.mxu0 %v544
        %v984 = vpop.f32.mrf.mxu0
        %v985 = vadd.f32 0.0, %v984
        %v986 = vpop.f32.mrf.mxu0
        %v987 = vadd.f32 0.0, %v986
        %988 = vmatprep.mubr.f32.mxu0 0.0
        %989 = vmatmul.mubr.f32.gmra.mxu0 %v547
        %v990 = vpop.f32.mrf.mxu0
        %v991 = vadd.f32 0.0, %v990
        %v992 = vpop.f32.mrf.mxu0
        %v993 = vadd.f32 0.0, %v992
        %994 = vmatprep.mubr.f32.mxu0 0.0
        %995 = vmatmul.mubr.f32.gmra.mxu0 %v550
        %v996 = vpop.f32.mrf.mxu0
        %v997 = vadd.f32 0.0, %v996
        %v998 = vpop.f32.mrf.mxu0
        %v999 = vadd.f32 0.0, %v998
        %1000 = vdwg.mxu0
        %v1001 = vld [vmem:[#allocation2] sm:$0x3]
        %v1002 = vmax.f32 %v619, %v631
        %v1003 = vmax.f32 %v625, %v637
        %v1004 = vmax.f32 %v1002, %v643
        %v1005 = vmax.f32 %v1003, %v649
        %v1006 = vmax.f32 %v1004, %v655
        %v1007 = vmax.f32 %v1005, %v661
        %v1008 = vmax.f32 %v1006, %v667
        %v1009 = vmax.f32 %v1007, %v673
        %v1010 = vmax.f32 %v1008, %v679
        %v1011 = vmax.f32 %v1009, %v685
        %v1012 = vmax.f32 %v1010, %v691
        %v1013 = vmax.f32 %v1011, %v697
        %v1014 = vmax.f32 %v1012, %v703
        %v1015 = vmax.f32 %v1013, %v709
        %v1016 = vmax.f32 %v1014, %v715
        %v1017 = vmax.f32 %v1015, %v721
        %v1018 = vmax.f32 %v1016, %v727
        %v1019 = vmax.f32 %v1017, %v733
        %v1020 = vmax.f32 %v1018, %v739
        %v1021 = vmax.f32 %v1019, %v745
        %v1022 = vmax.f32 %v1020, %v751
        %v1023 = vmax.f32 %v1021, %v757
        %v1024 = vmax.f32 %v1022, %v763
        %v1025 = vmax.f32 %v1023, %v769
        %v1026 = vmax.f32 %v1024, %v775
        %v1027 = vmax.f32 %v1025, %v781
        %v1028 = vmax.f32 %v1026, %v787
        %v1029 = vmax.f32 %v1027, %v793
        %v1030 = vmax.f32 %v1028, %v799
        %v1031 = vmax.f32 %v1029, %v805
        %v1032 = vmax.f32 %v1030, %v811
        %v1033 = vmax.f32 %v1031, %v817
        %v1034 = vmax.f32 %v1032, %v823
        %v1035 = vmax.f32 %v1033, %v829
        %v1036 = vmax.f32 %v1034, %v835
        %v1037 = vmax.f32 %v1035, %v841
        %v1038 = vmax.f32 %v1036, %v847
        %v1039 = vmax.f32 %v1037, %v853
        %v1040 = vmax.f32 %v1038, %v859
        %v1041 = vmax.f32 %v1039, %v865
        %v1042 = vmax.f32 %v1040, %v871
        %v1043 = vmax.f32 %v1041, %v877
        %v1044 = vmax.f32 %v1042, %v883
        %v1045 = vmax.f32 %v1043, %v889
        %v1046 = vmax.f32 %v1044, %v895
        %v1047 = vmax.f32 %v1045, %v901
        %v1048 = vmax.f32 %v1046, %v907
        %v1049 = vmax.f32 %v1047, %v913
        %v1050 = vmax.f32 %v1048, %v919
        %v1051 = vmax.f32 %v1049, %v925
        %v1052 = vmax.f32 %v1050, %v931
        %v1053 = vmax.f32 %v1051, %v937
        %v1054 = vmax.f32 %v1052, %v943
        %v1055 = vmax.f32 %v1053, %v949
        %v1056 = vmax.f32 %v1054, %v955
        %v1057 = vmax.f32 %v1055, %v961
        %v1058 = vmax.f32 %v1056, %v967
        %v1059 = vmax.f32 %v1057, %v973
        %v1060 = vmax.f32 %v1058, %v979
        %v1061 = vmax.f32 %v1059, %v985
        %v1062 = vmax.f32 %v1060, %v991
        %v1063 = vmax.f32 %v1061, %v997
        %v1064 = vmax.f32 %v1062, %v1063
        %v1065 = vrot.slane %v1064, 4
        %v1066 = vmax.f32 %v1064, %v1065
        %v1067 = vrot.slane %v1066, 2
        %v1068 = vmax.f32 %v1066, %v1067
        %v1069 = vrot.slane %v1068, 1
        %v1070 = vmax.f32 %v1068, %v1069
        %v1071 = vmax.f32 %v621, %v633
        %v1072 = vmax.f32 %v627, %v639
        %v1073 = vmax.f32 %v1071, %v645
        %v1074 = vmax.f32 %v1072, %v651
        %v1075 = vmax.f32 %v1073, %v657
        %v1076 = vmax.f32 %v1074, %v663
        %v1077 = vmax.f32 %v1075, %v669
        %v1078 = vmax.f32 %v1076, %v675
        %v1079 = vmax.f32 %v1077, %v681
        %v1080 = vmax.f32 %v1078, %v687
        %v1081 = vmax.f32 %v1079, %v693
        %v1082 = vmax.f32 %v1080, %v699
        %v1083 = vmax.f32 %v1081, %v705
        %v1084 = vmax.f32 %v1082, %v711
        %v1085 = vmax.f32 %v1083, %v717
        %v1086 = vmax.f32 %v1084, %v723
        %v1087 = vmax.f32 %v1085, %v729
        %v1088 = vmax.f32 %v1086, %v735
        %v1089 = vmax.f32 %v1087, %v741
        %v1090 = vmax.f32 %v1088, %v747
        %v1091 = vmax.f32 %v1089, %v753
        %v1092 = vmax.f32 %v1090, %v759
        %v1093 = vmax.f32 %v1091, %v765
        %v1094 = vmax.f32 %v1092, %v771
        %v1095 = vmax.f32 %v1093, %v777
        %v1096 = vmax.f32 %v1094, %v783
        %v1097 = vmax.f32 %v1095, %v789
        %v1098 = vmax.f32 %v1096, %v795
        %v1099 = vmax.f32 %v1097, %v801
        %v1100 = vmax.f32 %v1098, %v807
        %v1101 = vmax.f32 %v1099, %v813
        %v1102 = vmax.f32 %v1100, %v819
        %v1103 = vmax.f32 %v1101, %v825
        %v1104 = vmax.f32 %v1102, %v831
        %v1105 = vmax.f32 %v1103, %v837
        %v1106 = vmax.f32 %v1104, %v843
        %v1107 = vmax.f32 %v1105, %v849
        %v1108 = vmax.f32 %v1106, %v855
        %v1109 = vmax.f32 %v1107, %v861
        %v1110 = vmax.f32 %v1108, %v867
        %v1111 = vmax.f32 %v1109, %v873
        %v1112 = vmax.f32 %v1110, %v879
        %v1113 = vmax.f32 %v1111, %v885
        %v1114 = vmax.f32 %v1112, %v891
        %v1115 = vmax.f32 %v1113, %v897
        %v1116 = vmax.f32 %v1114, %v903
        %v1117 = vmax.f32 %v1115, %v909
        %v1118 = vmax.f32 %v1116, %v915
        %v1119 = vmax.f32 %v1117, %v921
        %v1120 = vmax.f32 %v1118, %v927
        %v1121 = vmax.f32 %v1119, %v933
        %v1122 = vmax.f32 %v1120, %v939
        %v1123 = vmax.f32 %v1121, %v945
        %v1124 = vmax.f32 %v1122, %v951
        %v1125 = vmax.f32 %v1123, %v957
        %v1126 = vmax.f32 %v1124, %v963
        %v1127 = vmax.f32 %v1125, %v969
        %v1128 = vmax.f32 %v1126, %v975
        %v1129 = vmax.f32 %v1127, %v981
        %v1130 = vmax.f32 %v1128, %v987
        %v1131 = vmax.f32 %v1129, %v993
        %v1132 = vmax.f32 %v1130, %v999
        %v1133 = vmax.f32 %v1131, %v1132
        %v1134 = vrot.slane %v1133, 4
        %v1135 = vmax.f32 %v1133, %v1134
        %v1136 = vrot.slane %v1135, 2
        %v1137 = vmax.f32 %v1135, %v1136
        %v1138 = vrot.slane %v1137, 1
        %v1139 = vmax.f32 %v1137, %v1138
        %v1142 = vcombine.low %v1070, %v1139
        %v1144 = vunpack.c.l.s4 1966171168
        %v1145 = vunpack.c.0.s8 %v1144
        %v1146 = vlaneseq
        %v1147 = vshrl.u32 %v1146, 7
        %v1148 = vsub.s32 %v1145, %v1147
        %v1149 = vrot.slane %v1142, %v1148
        %v1151 = vunpack.c.l.s4 1966171168
        %v1152 = vunpack.c.0.s8 %v1151
        %v1153 = vlaneseq
        %v1154 = vshrl.u32 %v1153, 7
        %v1155 = vsub.s32 %v1152, %v1154
        %v1156 = vrot.slane %v1149, %v1155
        %v1158 = vmax.f32 %v1001, %v1156
        %v1159 = vsub.f32 %v1001, %v1158
        %v1160 = vmul.f32 %v1159, 1.442695
        %v1161 = vpow.pop %v1160
        %v1163 = vlaneseq
        %v1164 = vshrl.u32 %v1163, 7
        %v1165 = vsub.s32 0, %v1164
        %v1166 = vrot.slane %v1158, %v1165
        %v1167 = vlaneseq
        %v1168 = vshrl.u32 %v1167, 7
        %v1169 = vsub.s32 1, %v1168
        %v1170 = vrot.slane %v1158, %v1169
        %v1173 = vsub.f32 %v619, %v1166
        %v1174 = vsub.f32 %v621, %v1170
        %v1175 = vsub.f32 %v625, %v1166
        %v1176 = vsub.f32 %v627, %v1170
        %v1177 = vsub.f32 %v631, %v1166
        %v1178 = vsub.f32 %v633, %v1170
        %v1179 = vsub.f32 %v637, %v1166
        %v1180 = vsub.f32 %v639, %v1170
        %v1181 = vsub.f32 %v643, %v1166
        %v1182 = vsub.f32 %v645, %v1170
        %v1183 = vsub.f32 %v649, %v1166
        %v1184 = vsub.f32 %v651, %v1170
        %v1185 = vsub.f32 %v655, %v1166
        %v1186 = vsub.f32 %v657, %v1170
        %v1187 = vsub.f32 %v661, %v1166
        %v1188 = vsub.f32 %v663, %v1170
        %v1189 = vsub.f32 %v667, %v1166
        %v1190 = vsub.f32 %v669, %v1170
        %v1191 = vsub.f32 %v673, %v1166
        %v1192 = vsub.f32 %v675, %v1170
        %v1193 = vsub.f32 %v679, %v1166
        %v1194 = vsub.f32 %v681, %v1170
        %v1195 = vsub.f32 %v685, %v1166
        %v1196 = vsub.f32 %v687, %v1170
        %v1197 = vsub.f32 %v691, %v1166
        %v1198 = vsub.f32 %v693, %v1170
        %v1199 = vsub.f32 %v697, %v1166
        %v1200 = vsub.f32 %v699, %v1170
        %v1201 = vsub.f32 %v703, %v1166
        %v1202 = vsub.f32 %v705, %v1170
        %v1203 = vsub.f32 %v709, %v1166
        %v1204 = vsub.f32 %v711, %v1170
        %v1205 = vsub.f32 %v715, %v1166
        %v1206 = vsub.f32 %v717, %v1170
        %v1207 = vsub.f32 %v721, %v1166
        %v1208 = vsub.f32 %v723, %v1170
        %v1209 = vsub.f32 %v727, %v1166
        %v1210 = vsub.f32 %v729, %v1170
        %v1211 = vsub.f32 %v733, %v1166
        %v1212 = vsub.f32 %v735, %v1170
        %v1213 = vsub.f32 %v739, %v1166
        %v1214 = vsub.f32 %v741, %v1170
        %v1215 = vsub.f32 %v745, %v1166
        %v1216 = vsub.f32 %v747, %v1170
        %v1217 = vsub.f32 %v751, %v1166
        %v1218 = vsub.f32 %v753, %v1170
        %v1219 = vsub.f32 %v757, %v1166
        %v1220 = vsub.f32 %v759, %v1170
        %v1221 = vsub.f32 %v763, %v1166
        %v1222 = vsub.f32 %v765, %v1170
        %v1223 = vsub.f32 %v769, %v1166
        %v1224 = vsub.f32 %v771, %v1170
        %v1225 = vsub.f32 %v775, %v1166
        %v1226 = vsub.f32 %v777, %v1170
        %v1227 = vsub.f32 %v781, %v1166
        %v1228 = vsub.f32 %v783, %v1170
        %v1229 = vsub.f32 %v787, %v1166
        %v1230 = vsub.f32 %v789, %v1170
        %v1231 = vsub.f32 %v793, %v1166
        %v1232 = vsub.f32 %v795, %v1170
        %v1233 = vsub.f32 %v799, %v1166
        %v1234 = vsub.f32 %v801, %v1170
        %v1235 = vsub.f32 %v805, %v1166
        %v1236 = vsub.f32 %v807, %v1170
        %v1237 = vsub.f32 %v811, %v1166
        %v1238 = vsub.f32 %v813, %v1170
        %v1239 = vsub.f32 %v817, %v1166
        %v1240 = vsub.f32 %v819, %v1170
        %v1241 = vsub.f32 %v823, %v1166
        %v1242 = vsub.f32 %v825, %v1170
        %v1243 = vsub.f32 %v829, %v1166
        %v1244 = vsub.f32 %v831, %v1170
        %v1245 = vsub.f32 %v835, %v1166
        %v1246 = vsub.f32 %v837, %v1170
        %v1247 = vsub.f32 %v841, %v1166
        %v1248 = vsub.f32 %v843, %v1170
        %v1249 = vsub.f32 %v847, %v1166
        %v1250 = vsub.f32 %v849, %v1170
        %v1251 = vsub.f32 %v853, %v1166
        %v1252 = vsub.f32 %v855, %v1170
        %v1253 = vsub.f32 %v859, %v1166
        %v1254 = vsub.f32 %v861, %v1170
        %v1255 = vsub.f32 %v865, %v1166
        %v1256 = vsub.f32 %v867, %v1170
        %v1257 = vsub.f32 %v871, %v1166
        %v1258 = vsub.f32 %v873, %v1170
        %v1259 = vsub.f32 %v877, %v1166
        %v1260 = vsub.f32 %v879, %v1170
        %v1261 = vsub.f32 %v883, %v1166
        %v1262 = vsub.f32 %v885, %v1170
        %v1263 = vsub.f32 %v889, %v1166
        %v1264 = vsub.f32 %v891, %v1170
        %v1265 = vsub.f32 %v895, %v1166
        %v1266 = vsub.f32 %v897, %v1170
        %v1267 = vsub.f32 %v901, %v1166
        %v1268 = vsub.f32 %v903, %v1170
        %v1269 = vsub.f32 %v907, %v1166
        %v1270 = vsub.f32 %v909, %v1170
        %v1271 = vsub.f32 %v913, %v1166
        %v1272 = vsub.f32 %v915, %v1170
        %v1273 = vsub.f32 %v919, %v1166
        %v1274 = vsub.f32 %v921, %v1170
        %v1275 = vsub.f32 %v925, %v1166
        %v1276 = vsub.f32 %v927, %v1170
        %v1277 = vsub.f32 %v931, %v1166
        %v1278 = vsub.f32 %v933, %v1170
        %v1279 = vsub.f32 %v937, %v1166
        %v1280 = vsub.f32 %v939, %v1170
        %v1281 = vsub.f32 %v943, %v1166
        %v1282 = vsub.f32 %v945, %v1170
        %v1283 = vsub.f32 %v949, %v1166
        %v1284 = vsub.f32 %v951, %v1170
        %v1285 = vsub.f32 %v955, %v1166
        %v1286 = vsub.f32 %v957, %v1170
        %v1287 = vsub.f32 %v961, %v1166
        %v1288 = vsub.f32 %v963, %v1170
        %v1289 = vsub.f32 %v967, %v1166
        %v1290 = vsub.f32 %v969, %v1170
        %v1291 = vsub.f32 %v973, %v1166
        %v1292 = vsub.f32 %v975, %v1170
        %v1293 = vsub.f32 %v979, %v1166
        %v1294 = vsub.f32 %v981, %v1170
        %v1295 = vsub.f32 %v985, %v1166
        %v1296 = vsub.f32 %v987, %v1170
        %v1297 = vsub.f32 %v991, %v1166
        %v1298 = vsub.f32 %v993, %v1170
        %v1299 = vsub.f32 %v997, %v1166
        %v1300 = vsub.f32 %v999, %v1170
        %v1301 = vmul.f32 %v1173, 1.442695
        %v1302 = vpow.pop %v1301
        %v1303 = vmul.f32 %v1174, 1.442695
        %v1304 = vpow.pop %v1303
        %v1305 = vmul.f32 %v1175, 1.442695
        %v1306 = vpow.pop %v1305
        %v1307 = vmul.f32 %v1176, 1.442695
        %v1308 = vpow.pop %v1307
        %v1309 = vmul.f32 %v1177, 1.442695
        %v1310 = vpow.pop %v1309
        %v1311 = vmul.f32 %v1178, 1.442695
        %v1312 = vpow.pop %v1311
        %v1313 = vmul.f32 %v1179, 1.442695
        %v1314 = vpow.pop %v1313
        %v1315 = vmul.f32 %v1180, 1.442695
        %v1316 = vpow.pop %v1315
        %v1317 = vmul.f32 %v1181, 1.442695
        %v1318 = vpow.pop %v1317
        %v1319 = vmul.f32 %v1182, 1.442695
        %v1320 = vpow.pop %v1319
        %v1321 = vmul.f32 %v1183, 1.442695
        %v1322 = vpow.pop %v1321
        %v1323 = vmul.f32 %v1184, 1.442695
        %v1324 = vpow.pop %v1323
        %v1325 = vmul.f32 %v1185, 1.442695
        %v1326 = vpow.pop %v1325
        %v1327 = vmul.f32 %v1186, 1.442695
        %v1328 = vpow.pop %v1327
        %v1329 = vmul.f32 %v1187, 1.442695
        %v1330 = vpow.pop %v1329
        %v1331 = vmul.f32 %v1188, 1.442695
        %v1332 = vpow.pop %v1331
        %v1333 = vmul.f32 %v1189, 1.442695
        %v1334 = vpow.pop %v1333
        %v1335 = vmul.f32 %v1190, 1.442695
        %v1336 = vpow.pop %v1335
        %v1337 = vmul.f32 %v1191, 1.442695
        %v1338 = vpow.pop %v1337
        %v1339 = vmul.f32 %v1192, 1.442695
        %v1340 = vpow.pop %v1339
        %v1341 = vmul.f32 %v1193, 1.442695
        %v1342 = vpow.pop %v1341
        %v1343 = vmul.f32 %v1194, 1.442695
        %v1344 = vpow.pop %v1343
        %v1345 = vmul.f32 %v1195, 1.442695
        %v1346 = vpow.pop %v1345
        %v1347 = vmul.f32 %v1196, 1.442695
        %v1348 = vpow.pop %v1347
        %v1349 = vmul.f32 %v1197, 1.442695
        %v1350 = vpow.pop %v1349
        %v1351 = vmul.f32 %v1198, 1.442695
        %v1352 = vpow.pop %v1351
        %v1353 = vmul.f32 %v1199, 1.442695
        %v1354 = vpow.pop %v1353
        %v1355 = vmul.f32 %v1200, 1.442695
        %v1356 = vpow.pop %v1355
        %v1357 = vmul.f32 %v1201, 1.442695
        %v1358 = vpow.pop %v1357
        %v1359 = vmul.f32 %v1202, 1.442695
        %v1360 = vpow.pop %v1359
        %v1361 = vmul.f32 %v1203, 1.442695
        %v1362 = vpow.pop %v1361
        %v1363 = vmul.f32 %v1204, 1.442695
        %v1364 = vpow.pop %v1363
        %v1365 = vmul.f32 %v1205, 1.442695
        %v1366 = vpow.pop %v1365
        %v1367 = vmul.f32 %v1206, 1.442695
        %v1368 = vpow.pop %v1367
        %v1369 = vmul.f32 %v1207, 1.442695
        %v1370 = vpow.pop %v1369
        %v1371 = vmul.f32 %v1208, 1.442695
        %v1372 = vpow.pop %v1371
        %v1373 = vmul.f32 %v1209, 1.442695
        %v1374 = vpow.pop %v1373
        %v1375 = vmul.f32 %v1210, 1.442695
        %v1376 = vpow.pop %v1375
        %v1377 = vmul.f32 %v1211, 1.442695
        %v1378 = vpow.pop %v1377
        %v1379 = vmul.f32 %v1212, 1.442695
        %v1380 = vpow.pop %v1379
        %v1381 = vmul.f32 %v1213, 1.442695
        %v1382 = vpow.pop %v1381
        %v1383 = vmul.f32 %v1214, 1.442695
        %v1384 = vpow.pop %v1383
        %v1385 = vmul.f32 %v1215, 1.442695
        %v1386 = vpow.pop %v1385
        %v1387 = vmul.f32 %v1216, 1.442695
        %v1388 = vpow.pop %v1387
        %v1389 = vmul.f32 %v1217, 1.442695
        %v1390 = vpow.pop %v1389
        %v1391 = vmul.f32 %v1218, 1.442695
        %v1392 = vpow.pop %v1391
        %v1393 = vmul.f32 %v1219, 1.442695
        %v1394 = vpow.pop %v1393
        %v1395 = vmul.f32 %v1220, 1.442695
        %v1396 = vpow.pop %v1395
        %v1397 = vmul.f32 %v1221, 1.442695
        %v1398 = vpow.pop %v1397
        %v1399 = vmul.f32 %v1222, 1.442695
        %v1400 = vpow.pop %v1399
        %v1401 = vmul.f32 %v1223, 1.442695
        %v1402 = vpow.pop %v1401
        %v1403 = vmul.f32 %v1224, 1.442695
        %v1404 = vpow.pop %v1403
        %v1405 = vmul.f32 %v1225, 1.442695
        %v1406 = vpow.pop %v1405
        %v1407 = vmul.f32 %v1226, 1.442695
        %v1408 = vpow.pop %v1407
        %v1409 = vmul.f32 %v1227, 1.442695
        %v1410 = vpow.pop %v1409
        %v1411 = vmul.f32 %v1228, 1.442695
        %v1412 = vpow.pop %v1411
        %v1413 = vmul.f32 %v1229, 1.442695
        %v1414 = vpow.pop %v1413
        %v1415 = vmul.f32 %v1230, 1.442695
        %v1416 = vpow.pop %v1415
        %v1417 = vmul.f32 %v1231, 1.442695
        %v1418 = vpow.pop %v1417
        %v1419 = vmul.f32 %v1232, 1.442695
        %v1420 = vpow.pop %v1419
        %v1421 = vmul.f32 %v1233, 1.442695
        %v1422 = vpow.pop %v1421
        %v1423 = vmul.f32 %v1234, 1.442695
        %v1424 = vpow.pop %v1423
        %v1425 = vmul.f32 %v1235, 1.442695
        %v1426 = vpow.pop %v1425
        %v1427 = vmul.f32 %v1236, 1.442695
        %v1428 = vpow.pop %v1427
        %v1429 = vmul.f32 %v1237, 1.442695
        %v1430 = vpow.pop %v1429
        %v1431 = vmul.f32 %v1238, 1.442695
        %v1432 = vpow.pop %v1431
        %v1433 = vmul.f32 %v1239, 1.442695
        %v1434 = vpow.pop %v1433
        %v1435 = vmul.f32 %v1240, 1.442695
        %v1436 = vpow.pop %v1435
        %v1437 = vmul.f32 %v1241, 1.442695
        %v1438 = vpow.pop %v1437
        %v1439 = vmul.f32 %v1242, 1.442695
        %v1440 = vpow.pop %v1439
        %v1441 = vmul.f32 %v1243, 1.442695
        %v1442 = vpow.pop %v1441
        %v1443 = vmul.f32 %v1244, 1.442695
        %v1444 = vpow.pop %v1443
        %v1445 = vmul.f32 %v1245, 1.442695
        %v1446 = vpow.pop %v1445
        %v1447 = vmul.f32 %v1246, 1.442695
        %v1448 = vpow.pop %v1447
        %v1449 = vmul.f32 %v1247, 1.442695
        %v1450 = vpow.pop %v1449
        %v1451 = vmul.f32 %v1248, 1.442695
        %v1452 = vpow.pop %v1451
        %v1453 = vmul.f32 %v1249, 1.442695
        %v1454 = vpow.pop %v1453
        %v1455 = vmul.f32 %v1250, 1.442695
        %v1456 = vpow.pop %v1455
        %v1457 = vmul.f32 %v1251, 1.442695
        %v1458 = vpow.pop %v1457
        %v1459 = vmul.f32 %v1252, 1.442695
        %v1460 = vpow.pop %v1459
        %v1461 = vmul.f32 %v1253, 1.442695
        %v1462 = vpow.pop %v1461
        %v1463 = vmul.f32 %v1254, 1.442695
        %v1464 = vpow.pop %v1463
        %v1465 = vmul.f32 %v1255, 1.442695
        %v1466 = vpow.pop %v1465
        %v1467 = vmul.f32 %v1256, 1.442695
        %v1468 = vpow.pop %v1467
        %v1469 = vmul.f32 %v1257, 1.442695
        %v1470 = vpow.pop %v1469
        %v1471 = vmul.f32 %v1258, 1.442695
        %v1472 = vpow.pop %v1471
        %v1473 = vmul.f32 %v1259, 1.442695
        %v1474 = vpow.pop %v1473
        %v1475 = vmul.f32 %v1260, 1.442695
        %v1476 = vpow.pop %v1475
        %v1477 = vmul.f32 %v1261, 1.442695
        %v1478 = vpow.pop %v1477
        %v1479 = vmul.f32 %v1262, 1.442695
        %v1480 = vpow.pop %v1479
        %v1481 = vmul.f32 %v1263, 1.442695
        %v1482 = vpow.pop %v1481
        %v1483 = vmul.f32 %v1264, 1.442695
        %v1484 = vpow.pop %v1483
        %v1485 = vmul.f32 %v1265, 1.442695
        %v1486 = vpow.pop %v1485
        %v1487 = vmul.f32 %v1266, 1.442695
        %v1488 = vpow.pop %v1487
        %v1489 = vmul.f32 %v1267, 1.442695
        %v1490 = vpow.pop %v1489
        %v1491 = vmul.f32 %v1268, 1.442695
        %v1492 = vpow.pop %v1491
        %v1493 = vmul.f32 %v1269, 1.442695
        %v1494 = vpow.pop %v1493
        %v1495 = vmul.f32 %v1270, 1.442695
        %v1496 = vpow.pop %v1495
        %v1497 = vmul.f32 %v1271, 1.442695
        %v1498 = vpow.pop %v1497
        %v1499 = vmul.f32 %v1272, 1.442695
        %v1500 = vpow.pop %v1499
        %v1501 = vmul.f32 %v1273, 1.442695
        %v1502 = vpow.pop %v1501
        %v1503 = vmul.f32 %v1274, 1.442695
        %v1504 = vpow.pop %v1503
        %v1505 = vmul.f32 %v1275, 1.442695
        %v1506 = vpow.pop %v1505
        %v1507 = vmul.f32 %v1276, 1.442695
        %v1508 = vpow.pop %v1507
        %v1509 = vmul.f32 %v1277, 1.442695
        %v1510 = vpow.pop %v1509
        %v1511 = vmul.f32 %v1278, 1.442695
        %v1512 = vpow.pop %v1511
        %v1513 = vmul.f32 %v1279, 1.442695
        %v1514 = vpow.pop %v1513
        %v1515 = vmul.f32 %v1280, 1.442695
        %v1516 = vpow.pop %v1515
        %v1517 = vmul.f32 %v1281, 1.442695
        %v1518 = vpow.pop %v1517
        %v1519 = vmul.f32 %v1282, 1.442695
        %v1520 = vpow.pop %v1519
        %v1521 = vmul.f32 %v1283, 1.442695
        %v1522 = vpow.pop %v1521
        %v1523 = vmul.f32 %v1284, 1.442695
        %v1524 = vpow.pop %v1523
        %v1525 = vmul.f32 %v1285, 1.442695
        %v1526 = vpow.pop %v1525
        %v1527 = vmul.f32 %v1286, 1.442695
        %v1528 = vpow.pop %v1527
        %v1529 = vmul.f32 %v1287, 1.442695
        %v1530 = vpow.pop %v1529
        %v1531 = vmul.f32 %v1288, 1.442695
        %v1532 = vpow.pop %v1531
        %v1533 = vmul.f32 %v1289, 1.442695
        %v1534 = vpow.pop %v1533
        %v1535 = vmul.f32 %v1290, 1.442695
        %v1536 = vpow.pop %v1535
        %v1537 = vmul.f32 %v1291, 1.442695
        %v1538 = vpow.pop %v1537
        %v1539 = vmul.f32 %v1292, 1.442695
        %v1540 = vpow.pop %v1539
        %v1541 = vmul.f32 %v1293, 1.442695
        %v1542 = vpow.pop %v1541
        %v1543 = vmul.f32 %v1294, 1.442695
        %v1544 = vpow.pop %v1543
        %v1545 = vmul.f32 %v1295, 1.442695
        %v1546 = vpow.pop %v1545
        %v1547 = vmul.f32 %v1296, 1.442695
        %v1548 = vpow.pop %v1547
        %v1549 = vmul.f32 %v1297, 1.442695
        %v1550 = vpow.pop %v1549
        %v1551 = vmul.f32 %v1298, 1.442695
        %v1552 = vpow.pop %v1551
        %v1553 = vmul.f32 %v1299, 1.442695
        %v1554 = vpow.pop %v1553
        %v1555 = vmul.f32 %v1300, 1.442695
        %v1556 = vpow.pop %v1555
        %v1557 = vld [vmem:[#allocation3] sm:$0x3]
        %v1558 = vmul.f32 %v1161, %v1557
        %v1559 = vadd.f32 %v1302, %v1306
        %v1560 = vadd.f32 %v1559, %v1310
        %v1561 = vadd.f32 %v1560, %v1314
        %v1562 = vadd.f32 %v1561, %v1318
        %v1563 = vadd.f32 %v1562, %v1322
        %v1564 = vadd.f32 %v1563, %v1326
        %v1565 = vadd.f32 %v1564, %v1330
        %v1566 = vadd.f32 %v1565, %v1334
        %v1567 = vadd.f32 %v1566, %v1338
        %v1568 = vadd.f32 %v1567, %v1342
        %v1569 = vadd.f32 %v1568, %v1346
        %v1570 = vadd.f32 %v1569, %v1350
        %v1571 = vadd.f32 %v1570, %v1354
        %v1572 = vadd.f32 %v1571, %v1358
        %v1573 = vadd.f32 %v1572, %v1362
        %v1574 = vadd.f32 %v1573, %v1366
        %v1575 = vadd.f32 %v1574, %v1370
        %v1576 = vadd.f32 %v1575, %v1374
        %v1577 = vadd.f32 %v1576, %v1378
        %v1578 = vadd.f32 %v1577, %v1382
        %v1579 = vadd.f32 %v1578, %v1386
        %v1580 = vadd.f32 %v1579, %v1390
        %v1581 = vadd.f32 %v1580, %v1394
        %v1582 = vadd.f32 %v1581, %v1398
        %v1583 = vadd.f32 %v1582, %v1402
        %v1584 = vadd.f32 %v1583, %v1406
        %v1585 = vadd.f32 %v1584, %v1410
        %v1586 = vadd.f32 %v1585, %v1414
        %v1587 = vadd.f32 %v1586, %v1418
        %v1588 = vadd.f32 %v1587, %v1422
        %v1589 = vadd.f32 %v1588, %v1426
        %v1590 = vadd.f32 %v1589, %v1430
        %v1591 = vadd.f32 %v1590, %v1434
        %v1592 = vadd.f32 %v1591, %v1438
        %v1593 = vadd.f32 %v1592, %v1442
        %v1594 = vadd.f32 %v1593, %v1446
        %v1595 = vadd.f32 %v1594, %v1450
        %v1596 = vadd.f32 %v1595, %v1454
        %v1597 = vadd.f32 %v1596, %v1458
        %v1598 = vadd.f32 %v1597, %v1462
        %v1599 = vadd.f32 %v1598, %v1466
        %v1600 = vadd.f32 %v1599, %v1470
        %v1601 = vadd.f32 %v1600, %v1474
        %v1602 = vadd.f32 %v1601, %v1478
        %v1603 = vadd.f32 %v1602, %v1482
        %v1604 = vadd.f32 %v1603, %v1486
        %v1605 = vadd.f32 %v1604, %v1490
        %v1606 = vadd.f32 %v1605, %v1494
        %v1607 = vadd.f32 %v1606, %v1498
        %v1608 = vadd.f32 %v1607, %v1502
        %v1609 = vadd.f32 %v1608, %v1506
        %v1610 = vadd.f32 %v1609, %v1510
        %v1611 = vadd.f32 %v1610, %v1514
        %v1612 = vadd.f32 %v1611, %v1518
        %v1613 = vadd.f32 %v1612, %v1522
        %v1614 = vadd.f32 %v1613, %v1526
        %v1615 = vadd.f32 %v1614, %v1530
        %v1616 = vadd.f32 %v1615, %v1534
        %v1617 = vadd.f32 %v1616, %v1538
        %v1618 = vadd.f32 %v1617, %v1542
        %v1619 = vadd.f32 %v1618, %v1546
        %v1620 = vadd.f32 %v1619, %v1550
        %v1621 = vadd.f32 %v1620, %v1554
        %v1622 = vrot.slane %v1621, 4
        %v1623 = vadd.f32 %v1621, %v1622
        %v1624 = vrot.slane %v1623, 2
        %v1625 = vadd.f32 %v1623, %v1624
        %v1626 = vrot.slane %v1625, 1
        %v1627 = vadd.f32 %v1625, %v1626
        %v1628 = vadd.f32 %v1304, %v1308
        %v1629 = vadd.f32 %v1628, %v1312
        %v1630 = vadd.f32 %v1629, %v1316
        %v1631 = vadd.f32 %v1630, %v1320
        %v1632 = vadd.f32 %v1631, %v1324
        %v1633 = vadd.f32 %v1632, %v1328
        %v1634 = vadd.f32 %v1633, %v1332
        %v1635 = vadd.f32 %v1634, %v1336
        %v1636 = vadd.f32 %v1635, %v1340
        %v1637 = vadd.f32 %v1636, %v1344
        %v1638 = vadd.f32 %v1637, %v1348
        %v1639 = vadd.f32 %v1638, %v1352
        %v1640 = vadd.f32 %v1639, %v1356
        %v1641 = vadd.f32 %v1640, %v1360
        %v1642 = vadd.f32 %v1641, %v1364
        %v1643 = vadd.f32 %v1642, %v1368
        %v1644 = vadd.f32 %v1643, %v1372
        %v1645 = vadd.f32 %v1644, %v1376
        %v1646 = vadd.f32 %v1645, %v1380
        %v1647 = vadd.f32 %v1646, %v1384
        %v1648 = vadd.f32 %v1647, %v1388
        %v1649 = vadd.f32 %v1648, %v1392
        %v1650 = vadd.f32 %v1649, %v1396
        %v1651 = vadd.f32 %v1650, %v1400
        %v1652 = vadd.f32 %v1651, %v1404
        %v1653 = vadd.f32 %v1652, %v1408
        %v1654 = vadd.f32 %v1653, %v1412
        %v1655 = vadd.f32 %v1654, %v1416
        %v1656 = vadd.f32 %v1655, %v1420
        %v1657 = vadd.f32 %v1656, %v1424
        %v1658 = vadd.f32 %v1657, %v1428
        %v1659 = vadd.f32 %v1658, %v1432
        %v1660 = vadd.f32 %v1659, %v1436
        %v1661 = vadd.f32 %v1660, %v1440
        %v1662 = vadd.f32 %v1661, %v1444
        %v1663 = vadd.f32 %v1662, %v1448
        %v1664 = vadd.f32 %v1663, %v1452
        %v1665 = vadd.f32 %v1664, %v1456
        %v1666 = vadd.f32 %v1665, %v1460
        %v1667 = vadd.f32 %v1666, %v1464
        %v1668 = vadd.f32 %v1667, %v1468
        %v1669 = vadd.f32 %v1668, %v1472
        %v1670 = vadd.f32 %v1669, %v1476
        %v1671 = vadd.f32 %v1670, %v1480
        %v1672 = vadd.f32 %v1671, %v1484
        %v1673 = vadd.f32 %v1672, %v1488
        %v1674 = vadd.f32 %v1673, %v1492
        %v1675 = vadd.f32 %v1674, %v1496
        %v1676 = vadd.f32 %v1675, %v1500
        %v1677 = vadd.f32 %v1676, %v1504
        %v1678 = vadd.f32 %v1677, %v1508
        %v1679 = vadd.f32 %v1678, %v1512
        %v1680 = vadd.f32 %v1679, %v1516
        %v1681 = vadd.f32 %v1680, %v1520
        %v1682 = vadd.f32 %v1681, %v1524
        %v1683 = vadd.f32 %v1682, %v1528
        %v1684 = vadd.f32 %v1683, %v1532
        %v1685 = vadd.f32 %v1684, %v1536
        %v1686 = vadd.f32 %v1685, %v1540
        %v1687 = vadd.f32 %v1686, %v1544
        %v1688 = vadd.f32 %v1687, %v1548
        %v1689 = vadd.f32 %v1688, %v1552
        %v1690 = vadd.f32 %v1689, %v1556
        %v1691 = vrot.slane %v1690, 4
        %v1692 = vadd.f32 %v1690, %v1691
        %v1693 = vrot.slane %v1692, 2
        %v1694 = vadd.f32 %v1692, %v1693
        %v1695 = vrot.slane %v1694, 1
        %v1696 = vadd.f32 %v1694, %v1695
        %v1699 = vcombine.low %v1627, %v1696
        %v1701 = vunpack.c.l.s4 1966171168
        %v1702 = vunpack.c.0.s8 %v1701
        %v1703 = vlaneseq
        %v1704 = vshrl.u32 %v1703, 7
        %v1705 = vsub.s32 %v1702, %v1704
        %v1706 = vrot.slane %v1699, %v1705
        %v1708 = vunpack.c.l.s4 1966171168
        %v1709 = vunpack.c.0.s8 %v1708
        %v1710 = vlaneseq
        %v1711 = vshrl.u32 %v1710, 7
        %v1712 = vsub.s32 %v1709, %v1711
        %v1713 = vrot.slane %v1706, %v1712
        %v1715 = vadd.f32 %v1558, %v1713
        %v1716 = vlaneseq
        %vm1717 = vcmp.ge.s32.totalorder %v1716, 0
        %vm1718 = vcmp.lt.s32.totalorder %v1716, 256
        %vm1719 = vmand %vm1717, %vm1718
        %1720 = vst.msk [vmem:[#allocation3] sm:$0x3] %vm1719, %v1715
        %v1721 = vld [vmem:[%s276] sm:$0xff]
        %v1722 = vld [vmem:[%s276 + $0x8] sm:$0xff]
        %v1723 = vld [vmem:[%s276 + $0x10] sm:$0xff]
        %v1724 = vld [vmem:[%s276 + $0x18] sm:$0xff]
        %1725 = vmatprep.subr.mxu0 %v1364
        %1726 = vmatpush1.msra.mxu0 %v1362
        %1727 = vmatprep.subr.mxu0 %v1360
        %1728 = vmatpush1.msra.mxu0 %v1358
        %1729 = vmatprep.subr.mxu0 %v1356
        %1730 = vmatpush1.msra.mxu0 %v1354
        %1731 = vmatprep.subr.mxu0 %v1352
        %1732 = vmatpush1.msra.mxu0 %v1350
        %1733 = vmatprep.subr.mxu0 %v1348
        %1734 = vmatpush1.msra.mxu0 %v1346
        %1735 = vmatprep.subr.mxu0 %v1344
        %1736 = vmatpush1.msra.mxu0 %v1342
        %1737 = vmatprep.subr.mxu0 %v1340
        %1738 = vmatpush1.msra.mxu0 %v1338
        %1739 = vmatprep.subr.mxu0 %v1336
        %1740 = vmatpush1.msra.mxu0 %v1334
        %1741 = vmatprep.subr.mxu0 %v1332
        %1742 = vmatpush1.msra.mxu0 %v1330
        %1743 = vmatprep.subr.mxu0 %v1328
        %1744 = vmatpush1.msra.mxu0 %v1326
        %1745 = vmatprep.subr.mxu0 %v1324
        %1746 = vmatpush1.msra.mxu0 %v1322
        %1747 = vmatprep.subr.mxu0 %v1320
        %1748 = vmatpush1.msra.mxu0 %v1318
        %1749 = vmatprep.subr.mxu0 %v1316
        %1750 = vmatpush1.msra.mxu0 %v1314
        %1751 = vmatprep.subr.mxu0 %v1312
        %1752 = vmatpush1.msra.mxu0 %v1310
        %1753 = vmatprep.subr.mxu0 %v1308
        %1754 = vmatpush1.msra.mxu0 %v1306
        %1755 = vmatprep.subr.mxu0 %v1304
        %1756 = vmatpush1.msra.mxu0 %v1302
        %1757 = vmatprep.subr.mxu0 %v1428
        %1758 = vmatpush2.msra.mxu0 %v1426
        %1759 = vmatprep.subr.mxu0 %v1424
        %1760 = vmatpush2.msra.mxu0 %v1422
        %1761 = vmatprep.subr.mxu0 %v1420
        %1762 = vmatpush2.msra.mxu0 %v1418
        %1763 = vmatprep.subr.mxu0 %v1416
        %1764 = vmatpush2.msra.mxu0 %v1414
        %1765 = vmatprep.subr.mxu0 %v1412
        %1766 = vmatpush2.msra.mxu0 %v1410
        %1767 = vmatprep.subr.mxu0 %v1408
        %1768 = vmatpush2.msra.mxu0 %v1406
        %1769 = vmatprep.subr.mxu0 %v1404
        %1770 = vmatpush2.msra.mxu0 %v1402
        %1771 = vmatprep.subr.mxu0 %v1400
        %1772 = vmatpush2.msra.mxu0 %v1398
        %1773 = vmatprep.subr.mxu0 %v1396
        %1774 = vmatpush2.msra.mxu0 %v1394
        %1775 = vmatprep.subr.mxu0 %v1392
        %1776 = vmatpush2.msra.mxu0 %v1390
        %1777 = vmatprep.subr.mxu0 %v1388
        %1778 = vmatpush2.msra.mxu0 %v1386
        %1779 = vmatprep.subr.mxu0 %v1384
        %1780 = vmatpush2.msra.mxu0 %v1382
        %1781 = vmatprep.subr.mxu0 %v1380
        %1782 = vmatpush2.msra.mxu0 %v1378
        %1783 = vmatprep.subr.mxu0 %v1376
        %1784 = vmatpush2.msra.mxu0 %v1374
        %1785 = vmatprep.subr.mxu0 %v1372
        %1786 = vmatpush2.msra.mxu0 %v1370
        %1787 = vmatprep.subr.mxu0 %v1368
        %1788 = vmatpush2.msra.mxu0 %v1366
        %1789 = vmatprep.mubr.f32.mxu0 %v1722
        %1790 = vmatmul.mubr.f32.gmra.mxu0 %v1721
        %v1791 = vpop.f32.mrf.mxu0
        %v1792 = vadd.f32 0.0, %v1791
        %v1793 = vpop.f32.mrf.mxu0
        %v1794 = vadd.f32 0.0, %v1793
        %1795 = vdwg.mxu0
        %1796 = vmatprep.subr.mxu0 %v1492
        %1797 = vmatpush1.msra.mxu0 %v1490
        %1798 = vmatprep.subr.mxu0 %v1488
        %1799 = vmatpush1.msra.mxu0 %v1486
        %1800 = vmatprep.subr.mxu0 %v1484
        %1801 = vmatpush1.msra.mxu0 %v1482
        %1802 = vmatprep.subr.mxu0 %v1480
        %1803 = vmatpush1.msra.mxu0 %v1478
        %1804 = vmatprep.subr.mxu0 %v1476
        %1805 = vmatpush1.msra.mxu0 %v1474
        %1806 = vmatprep.subr.mxu0 %v1472
        %1807 = vmatpush1.msra.mxu0 %v1470
        %1808 = vmatprep.subr.mxu0 %v1468
        %1809 = vmatpush1.msra.mxu0 %v1466
        %1810 = vmatprep.subr.mxu0 %v1464
        %1811 = vmatpush1.msra.mxu0 %v1462
        %1812 = vmatprep.subr.mxu0 %v1460
        %1813 = vmatpush1.msra.mxu0 %v1458
        %1814 = vmatprep.subr.mxu0 %v1456
        %1815 = vmatpush1.msra.mxu0 %v1454
        %1816 = vmatprep.subr.mxu0 %v1452
        %1817 = vmatpush1.msra.mxu0 %v1450
        %1818 = vmatprep.subr.mxu0 %v1448
        %1819 = vmatpush1.msra.mxu0 %v1446
        %1820 = vmatprep.subr.mxu0 %v1444
        %1821 = vmatpush1.msra.mxu0 %v1442
        %1822 = vmatprep.subr.mxu0 %v1440
        %1823 = vmatpush1.msra.mxu0 %v1438
        %1824 = vmatprep.subr.mxu0 %v1436
        %1825 = vmatpush1.msra.mxu0 %v1434
        %1826 = vmatprep.subr.mxu0 %v1432
        %1827 = vmatpush1.msra.mxu0 %v1430
        %1828 = vmatprep.subr.mxu0 %v1556
        %1829 = vmatpush2.msra.mxu0 %v1554
        %1830 = vmatprep.subr.mxu0 %v1552
        %1831 = vmatpush2.msra.mxu0 %v1550
        %1832 = vmatprep.subr.mxu0 %v1548
        %1833 = vmatpush2.msra.mxu0 %v1546
        %1834 = vmatprep.subr.mxu0 %v1544
        %1835 = vmatpush2.msra.mxu0 %v1542
        %1836 = vmatprep.subr.mxu0 %v1540
        %1837 = vmatpush2.msra.mxu0 %v1538
        %1838 = vmatprep.subr.mxu0 %v1536
        %1839 = vmatpush2.msra.mxu0 %v1534
        %1840 = vmatprep.subr.mxu0 %v1532
        %1841 = vmatpush2.msra.mxu0 %v1530
        %1842 = vmatprep.subr.mxu0 %v1528
        %1843 = vmatpush2.msra.mxu0 %v1526
        %1844 = vmatprep.subr.mxu0 %v1524
        %1845 = vmatpush2.msra.mxu0 %v1522
        %1846 = vmatprep.subr.mxu0 %v1520
        %1847 = vmatpush2.msra.mxu0 %v1518
        %1848 = vmatprep.subr.mxu0 %v1516
        %1849 = vmatpush2.msra.mxu0 %v1514
        %1850 = vmatprep.subr.mxu0 %v1512
        %1851 = vmatpush2.msra.mxu0 %v1510
        %1852 = vmatprep.subr.mxu0 %v1508
        %1853 = vmatpush2.msra.mxu0 %v1506
        %1854 = vmatprep.subr.mxu0 %v1504
        %1855 = vmatpush2.msra.mxu0 %v1502
        %1856 = vmatprep.subr.mxu0 %v1500
        %1857 = vmatpush2.msra.mxu0 %v1498
        %1858 = vmatprep.subr.mxu0 %v1496
        %1859 = vmatpush2.msra.mxu0 %v1494
        %1860 = vmatprep.mubr.f32.mxu0 %v1724
        %1861 = vmatmul.mubr.f32.gmra.mxu0 %v1723
        %v1862 = vpop.f32.mrf.mxu0
        %v1863 = vadd.f32 %v1792, %v1862
        %v1864 = vpop.f32.mrf.mxu0
        %v1865 = vadd.f32 %v1794, %v1864
        %1866 = vdwg.mxu0
        %v1867 = vld [vmem:[#allocation4] sm:$0xff]
        %v1868 = vld [vmem:[#allocation4 + $0x8] sm:$0xff]
        %v1870 = vlaneseq
        %v1871 = vshrl.u32 %v1870, 7
        %v1872 = vsub.s32 0, %v1871
        %v1873 = vrot.slane %v1161, %v1872
        %v1874 = vlaneseq
        %v1875 = vshrl.u32 %v1874, 7
        %v1876 = vsub.s32 1, %v1875
        %v1877 = vrot.slane %v1161, %v1876
        %v1880 = vmul.f32 %v1873, %v1867
        %v1881 = vmul.f32 %v1877, %v1868
        %v1882 = vadd.f32 %v1880, %v1863
        %v1883 = vadd.f32 %v1881, %v1865
        %1884 = vst [vmem:[#allocation4] sm:$0xff] %v1882
        %1885 = vst [vmem:[#allocation4 + $0x8] sm:$0xff] %v1883
        %1886 = vst.msk [vmem:[#allocation2] sm:$0x3] %vm1719, %v1158
        %p1887 = scmp.eq.s32.totalorder %s24, 1
        // Predicated region
        $region37: #{tpu_custom_call.1} parent=31 // pred_check
          %p1888 = pneg %p1887
        $region38: #{tpu_custom_call.1} parent=31 // pred_check_branch
          %1890 = sbr.rel (%p1888) target = $region40
        $region39: #{tpu_custom_call.1} parent=31 // pred_region
          %v1891 = vld [vmem:[#allocation3] sm:$0x3]
          %v1892 = vrcp.pop %v1891
          %v1893 = vld [vmem:[#allocation4] sm:$0xff]
          %v1894 = vld [vmem:[#allocation4 + $0x8] sm:$0xff]
          %v1896 = vlaneseq
          %v1897 = vshrl.u32 %v1896, 7
          %v1898 = vsub.s32 0, %v1897
          %v1899 = vrot.slane %v1892, %v1898
          %v1900 = vlaneseq
          %v1901 = vshrl.u32 %v1900, 7
          %v1902 = vsub.s32 1, %v1901
          %v1903 = vrot.slane %v1892, %v1902
          %v1906 = vmul.f32 %v1893, %v1899
          %v1907 = vmul.f32 %v1894, %v1903
          %1908 = vst [vmem:[%s247] sm:$0xff] %v1906
          %1909 = vst [vmem:[%s247 + $0x8] sm:$0xff] %v1907
        $region40: #{tpu_custom_call.1} parent=31 // pred_fallthru
          _
        %s1910 = sand.u32 %s130, 1
        %s1911 = scalar_lea.sflag [#allocation6], %s1910
        %s1912 = sand.u32 %s130, 1
        %s1913 = smul.addr %s1912, 16
        %s1914 = scalar_lea.vmem [#allocation5], %s1913
        // Predicated region
        $region41: #{tpu_custom_call.1} parent=31 // pred_check
          %p1915 = pneg %p140
        $region42: #{tpu_custom_call.1} parent=31 // pred_check_branch
          %1917 = sbr.rel (%p1915) target = $region44
        $region43: #{tpu_custom_call.1} parent=31 // pred_region
          %s1918 = smul.u32 2, %s23
          %s1920 = ssub.s32 256, 256
          %1921 = vsyncadd %s1911, %s1920
          %s1922 = smul.addr %s22, 2
          %s1923 = sadd.s32 %s1918, %s1922
          %s1924 = smul.addr %s1923, 128
          %s1925 = scalar_lea.hbm %s3, %s1924
          %s1927 = sshll.u32 %s1914, 4
          %s1928 = int_to_ptr.vmem [resolvable:$true] %s1927
          %1930 = dma.vmem_to_hbm [thread:$0]  %s1928, 256, %s1925, %s1911
        $region44: #{tpu_custom_call.1} parent=31 // pred_fallthru
          _
      $region32: #{tpu_custom_call.1} parent=5 // pred_fallthru
        _
      %p1931 = scmp.le.s32.totalorder 2, %s12
      // Predicated region
      $region45: #{tpu_custom_call.1} parent=5 // pred_check
        %p1932 = pneg %p1931
      $region46: #{tpu_custom_call.1} parent=5 // pred_check_branch
        %1934 = sbr.rel (%p1932) target = $region48
      $region47: #{tpu_custom_call.1} parent=5 // pred_region
        %s1935 = ssub.s32 %s12, 2
        // Predicated region
        $region49: #{tpu_custom_call.1} parent=47 // pred_check
          %p1936 = pneg %p146
        $region50: #{tpu_custom_call.1} parent=47 // pred_check_branch
          %1938 = sbr.rel (%p1936) target = $region52
        $region51: #{tpu_custom_call.1} parent=47 // pred_region
          %s1939 = sand.u32 %s131, 1
          %s1940 = scalar_lea.sflag [#allocation6], %s1939
          %s1941 = sand.u32 %s131, 1
          %s1942 = smul.addr %s1941, 16
          %s1943 = scalar_lea.vmem [#allocation5], %s1942
          %1944 = dma.done %s1940, 256
        $region52: #{tpu_custom_call.1} parent=47 // pred_fallthru
          _
      $region48: #{tpu_custom_call.1} parent=5 // pred_fallthru
        _
    $region6: #{tpu_custom_call.1} parent=1 // loop_footer
      %s16 = sadd.s32 1, %s12
    $region7: #{tpu_custom_call.1} parent=1 // loop_footer_branch
      %11 = sbr.rel target = $region3
    $region8: #{tpu_custom_call.1} parent=1 // loop_exit
      _
    %1945 = vsyncpa [#allocation6], 1
    %s1946 = scalar_lea.sflag [#allocation6], 1
    %1947 = vsyncpa %s1946, 1

</llo_original>
